<compile_context>
chip_gen: v7x
topology: tpu7x:2x2x1
jax: 0.10.0
libtpu: 0.0.40
codegen_flags: <defaults>
</compile_context>

<pallas_src>
import functools

import numpy as np
import jax
import jax.numpy as jnp
from jax import lax
from jax.experimental import pallas as pl
from jax.experimental.pallas import tpu as pltpu

EPS = 1e-5          # nn.InstanceNorm2d default
NEG_SLOPE = 0.01    # nn.LeakyReLU default


# --------------------- static tap-gather (im2col-as-matmul) ---------------------
def build_tap_gather(h_in, w_in, stride, ksize=3, pad=1):
    """G[t, q, p] = 1 iff flat input position p feeds flat output position q for tap t.
    Encodes zero-padding (all-zero rows) and stride; built once from static shapes."""
    h_out = (h_in + 2 * pad - ksize) // stride + 1
    w_out = (w_in + 2 * pad - ksize) // stride + 1
    g = np.zeros((ksize * ksize, h_out * w_out, h_in * w_in), np.float32)
    for dh in range(ksize):
        for dw in range(ksize):
            t = dh * ksize + dw
            for i in range(h_out):
                hi = stride * i + dh - pad
                if hi < 0 or hi >= h_in:
                    continue
                for j in range(w_out):
                    wi = stride * j + dw - pad
                    if wi < 0 or wi >= w_in:
                        continue
                    g[t, i * w_out + j, hi * w_in + wi] = 1.0
    return g, h_out, w_out


# -------------------------------- Pallas kernel ---------------------------------
def _encoder_kernel(a_ref, *refs):
    """refs = (g_0, wcol_0, ..., g_{L-1}, wcol_{L-1}, wend_col, out_ref).

    Layout: activations are (P, N*C) -- spatial on sublanes, (sample, channel) on lanes.
    Per layer:
      y     = G_stacked(9*P_out, P_in) @ bf16(a)          (one MXU issue, exact selection)
      x_col = concat_t y[t*P_out:(t+1)*P_out, :]  -> (P_out, 9*N*Cin)  (taps into lanes)
      acc   = x_col @ W_col(9*N*Cin, N*Cout)              (one MXU issue, f32 accum)
      InstanceNorm (two-pass var) + LeakyReLU in f32.
    End conv: one (1, P_last*N*C) x (P_last*N*C, N*z) matmul.
    """
    out_ref = refs[-1]
    wend_ref = refs[-2]
    n_layers = (len(refs) - 2) // 2

    a = a_ref[...]                                            # (P0, N*C0) f32
    for layer in range(n_layers):
        g_ref = refs[2 * layer]                               # (9*P_out, P_in)     bf16
        w_ref = refs[2 * layer + 1]                           # (9*N*Cin, N*Cout)   bf16
        nc_in = a.shape[1]
        n_tap = w_ref.shape[0] // nc_in
        p_out = g_ref.shape[0] // n_tap

        # (2) single stacked gather matmul on the MXU (handles pad + stride).
        y = jnp.dot(g_ref[...], a.astype(jnp.bfloat16),
                    preferred_element_type=jnp.float32)       # (9*P_out, N*Cin) f32, exact

        # fold the tap axis into lanes (sublane slices at 8-aligned offsets + lane concat)
        x_col = jnp.concatenate(
            [y[t * p_out:(t + 1) * p_out, :] for t in range(n_tap)], axis=1)

        # (1) single channel-mix matmul, K = 9*N*Cin, f32 accumulation in the MXU.
        acc = jnp.dot(x_col.astype(jnp.bfloat16), w_ref[...],
                      preferred_element_type=jnp.float32)     # (P_out, N*Cout)

        # InstanceNorm2d: per-lane == per-(sample, channel) spatial stats.
        # Two-pass variance (review correctness concern): var = mean((x - mean)^2).
        mean = jnp.mean(acc, axis=0, keepdims=True)
        cent = acc - mean
        var = jnp.mean(cent * cent, axis=0, keepdims=True)
        y_n = cent * lax.rsqrt(var + EPS)
        # LeakyReLU(0.01)
        a = jnp.where(y_n >= 0.0, y_n, y_n * NEG_SLOPE)

    # (3) end ConvModule (full remaining spatial extent, no norm / no activation):
    # flatten spatial into lanes and do ONE matmul.
    p_last = a.shape[0]
    x_end = jnp.concatenate([a[p:p + 1, :] for p in range(p_last)], axis=1)  # (1, P*N*C)
    out_ref[...] = jnp.dot(x_end.astype(jnp.bfloat16), wend_ref[...],
                           preferred_element_type=jnp.float32)               # (1, N*z)


def _full_block_spec(arr):
    nd = arr.ndim
    return pl.BlockSpec(arr.shape, lambda i: (0,) * nd)


def _encoder_pallas_call(a0, g_list, wcol_list, wend_col, n_batch, z_dim):
    inputs = [a0]
    for g, w in zip(g_list, wcol_list):
        inputs += [g, w]
    inputs.append(wend_col)

    # Advisory cost estimate for the XLA scheduler (fused matmul shapes).
    flops = 0
    transcendentals = 0
    bytes_accessed = a0.size * a0.dtype.itemsize + n_batch * z_dim * 4
    for g, w in zip(g_list, wcol_list):
        gm, gk = g.shape                                      # (9*P_out, P_in)
        wk, wn = w.shape                                      # (9*N*Cin, N*Cout)
        nc_in = wk // 9
        p_out = gm // 9
        flops += 2 * gm * gk * nc_in                          # stacked gather matmul
        flops += 2 * p_out * wk * wn                          # single channel-mix matmul
        transcendentals += wn                                 # rsqrt per (sample, channel)
        bytes_accessed += g.size * 2 + w.size * 2
    ek, en = wend_col.shape
    flops += 2 * ek * en                                      # single end-conv matmul
    bytes_accessed += wend_col.size * 2

    out_shape = jax.ShapeDtypeStruct((1, n_batch * z_dim), jnp.float32)
    return pl.pallas_call(
        _encoder_kernel,
        grid=(1,),                                            # whole net, one step, all VMEM
        in_specs=[_full_block_spec(x) for x in inputs],
        out_specs=pl.BlockSpec((1, n_batch * z_dim), lambda i: (0, 0)),
        out_shape=out_shape,
        compiler_params=pltpu.CompilerParams(dimension_semantics=("arbitrary",)),
        cost_estimate=pl.CostEstimate(flops=int(flops),
                                      transcendentals=int(transcendentals),
                                      bytes_accessed=int(bytes_accessed)),
    )(*inputs)


# ---------------------------- wrapper (layout glue only) ------------------------
def encoder_forward(x_nchw, params, strides):
    """Encoder forward: start/middle ConvModules (3x3, stride, pad=1, bias=False) +
    InstanceNorm2d + LeakyReLU, then the full-spatial end conv (to_1x1=True)."""
    n, c_in, h, w_sp = x_nchw.shape
    # NCHW -> wide (H*W, N*C): spatial on sublanes, (sample, channel) on lanes.
    a0 = jnp.transpose(x_nchw, (2, 3, 0, 1)).reshape(h * w_sp, n * c_in)

    eye_n = jnp.eye(n, dtype=jnp.float32)

    def block_diag_cols(w_taps):
        # (T, Cin, Cout) -> (T*N*Cin, N*Cout): taps major on rows, block-diag over samples.
        t, ci, co = w_taps.shape
        full = eye_n[None, :, None, :, None] * w_taps[:, None, :, None, :]
        return full.reshape(t * n * ci, n * co).astype(jnp.bfloat16)

    g_list, wcol_list = [], []
    hh, ww = h, w_sp
    for w_hwio, s in zip(params["convs"], strides):
        g_np, hh, ww = build_tap_gather(hh, ww, s)
        t, p_out, p_in = g_np.shape
        # taps stacked along sublanes -> ONE gather matmul per layer. 0/1 exact in bf16.
        g_list.append(jnp.asarray(g_np.reshape(t * p_out, p_in), dtype=jnp.bfloat16))
        kh, kw, ci, co = w_hwio.shape
        wcol_list.append(block_diag_cols(w_hwio.reshape(kh * kw, ci, co)))

    w_end = params["end"]                                     # (hh, ww, C_last, z_dim)
    assert w_end.shape[0] == hh and w_end.shape[1] == ww
    c_last, z_dim = w_end.shape[2], w_end.shape[3]
    wend_col = block_diag_cols(w_end.reshape(hh * ww, c_last, z_dim))  # (P*N*C, N*z)

    # Dense-G gather scales as O((H*W)^2) bytes; guard against the scoped-VMEM limit
    # (v7x is the binding constraint; 2x for the BlockSpec pipeline's double-buffering).
    const_bytes = sum(int(np.prod(g.shape)) * 2 for g in g_list)
    const_bytes += sum(int(np.prod(w.shape)) * 2 for w in wcol_list)
    const_bytes += int(np.prod(wend_col.shape)) * 2
    assert 2 * const_bytes < 24 * 2 ** 20, (
        "dense tap-gather constants too large for VMEM; "
        "TODO(synk): switch to a P_out-tiled grid (sum/sumsq InstanceNorm accumulators) "
        "or strided-slice/roll gathers for large images")

    out_wide = _encoder_pallas_call(a0, g_list, wcol_list, wend_col, n, z_dim)
    return out_wide.reshape(n, z_dim, 1, 1)                   # (N, z_dim, 1, 1)


def init_params(key, in_ch, h_size, z_dim, end_hw):
    keys = jax.random.split(key, len(h_size) + 1)
    convs, c_prev = [], in_ch
    for i, hsz in enumerate(h_size):
        convs.append(0.1 * jax.random.normal(keys[i], (3, 3, c_prev, hsz), jnp.float32))
        c_prev = hsz
    w_end = 0.1 * jax.random.normal(keys[-1], (end_hw[0], end_hw[1], c_prev, z_dim),
                                    jnp.float32)
    return {"convs": convs, "end": w_end}


# ------------------------------ pure-JAX reference ------------------------------
def encoder_reference(x_nchw, params, strides):
    x = jnp.transpose(x_nchw, (0, 2, 3, 1))                   # NCHW -> NHWC
    for w_hwio, s in zip(params["convs"], strides):
        y = lax.conv_general_dilated(x, w_hwio, (s, s), [(1, 1), (1, 1)],
                                     dimension_numbers=("NHWC", "HWIO", "NHWC"))
        mean = jnp.mean(y, axis=(1, 2), keepdims=True)
        var = jnp.mean(jnp.square(y - mean), axis=(1, 2), keepdims=True)
        y = (y - mean) / jnp.sqrt(var + EPS)
        x = jnp.where(y >= 0.0, y, NEG_SLOPE * y)
    y = lax.conv_general_dilated(x, params["end"], (1, 1), [(0, 0), (0, 0)],
                                 dimension_numbers=("NHWC", "HWIO", "NHWC"))
    return jnp.transpose(y, (0, 3, 1, 2))                     # (N, z_dim, 1, 1)


# -------------------------------------- main -------------------------------------
if __name__ == "__main__":
    # Encoder(image_size=(4,16,16), h_size=(16,32), strides=[2,2], z_dim=32, to_1x1=True)
    # spatial: 16 -> 8 -> 4 -> 1.
    B, C_IN, HW = 2, 4, 16
    H_SIZE = (16, 32)
    STRIDES = (2, 2)                       # nn default: [2]*len(h_size)
    Z_DIM = 32
    END_HW = (HW // 4, HW // 4)            # (4, 4) full-spatial end kernel

    key = jax.random.PRNGKey(0)
    kx, kp = jax.random.split(key)
    x = jax.random.normal(kx, (B, C_IN, HW, HW), jnp.float32)     # NCHW input
    params = init_params(kp, C_IN, H_SIZE, Z_DIM, END_HW)

    fwd = jax.jit(functools.partial(encoder_forward, strides=STRIDES))
    out = jax.block_until_ready(fwd(x, params))
    assert out.shape == (B, Z_DIM, 1, 1), out.shape

    ref = encoder_reference(x, params, STRIDES)
    diff = (out - ref).ravel()
    rel_err = float(jnp.linalg.norm(diff) / jnp.linalg.norm(ref.ravel()))
    max_err = float(jnp.max(jnp.abs(diff)))
    # bf16 MXU operands (f32 accumulation / norm / act) vs. pure-f32 reference.
    assert rel_err < 3e-2, (rel_err, max_err)
    assert jnp.allclose(out, ref, atol=1e-1, rtol=1e-1), (rel_err, max_err)

    print("KERNEL_OK")
</pallas_src>

<mosaic_0001>
module attributes {stable_mosaic.version = 11 : i64} {
  func.func @_encoder_kernel(%arg0: i32, %arg1: memref<256x8xf32, #tpu.memory_space<vmem>>, %arg2: memref<576x256xbf16, #tpu.memory_space<vmem>>, %arg3: memref<72x32xbf16, #tpu.memory_space<vmem>>, %arg4: memref<144x64xbf16, #tpu.memory_space<vmem>>, %arg5: memref<288x64xbf16, #tpu.memory_space<vmem>>, %arg6: memref<1024x64xbf16, #tpu.memory_space<vmem>>, %arg7: memref<1x64xf32, #tpu.memory_space<vmem>>) attributes {dimension_semantics = [#tpu.dimension_semantics<arbitrary>], iteration_bounds = array<i64: 1>, scalar_prefetch = 0 : i64, scratch_operands = 0 : i64, tpu.core_type = #tpu.core_type<tc>, window_params = [{pipeline_mode = #tpu.pipeline_mode<synchronous>, transform_indices = @transform_0, window_bounds = array<i64: 256, 8>}, {pipeline_mode = #tpu.pipeline_mode<synchronous>, transform_indices = @transform_1, window_bounds = array<i64: 576, 256>}, {pipeline_mode = #tpu.pipeline_mode<synchronous>, transform_indices = @transform_2, window_bounds = array<i64: 72, 32>}, {pipeline_mode = #tpu.pipeline_mode<synchronous>, transform_indices = @transform_3, window_bounds = array<i64: 144, 64>}, {pipeline_mode = #tpu.pipeline_mode<synchronous>, transform_indices = @transform_4, window_bounds = array<i64: 288, 64>}, {pipeline_mode = #tpu.pipeline_mode<synchronous>, transform_indices = @transform_5, window_bounds = array<i64: 1024, 64>}, {pipeline_mode = #tpu.pipeline_mode<synchronous>, transform_indices = @transform_6, window_bounds = array<i64: 1, 64>}]} {
    %c0 = arith.constant 0 : index
    %c0_0 = arith.constant 0 : index
    %0 = vector.load %arg1[%c0, %c0_0] : memref<256x8xf32, #tpu.memory_space<vmem>>, vector<256x8xf32>
    %c0_1 = arith.constant 0 : index
    %c0_2 = arith.constant 0 : index
    %1 = vector.load %arg2[%c0_1, %c0_2] : memref<576x256xbf16, #tpu.memory_space<vmem>>, vector<576x256xbf16>
    %2 = arith.truncf %0 : vector<256x8xf32> to vector<256x8xbf16>
    %cst = arith.constant dense<0.000000e+00> : vector<576x8xf32>
    %3 = tpu.matmul %1, %2, %cst {dimension_numbers = #tpu.dot_dimension_numbers<[1], [0], [0], [1], [0, 0, 1, 1], [], []>} : vector<576x256xbf16>, vector<256x8xbf16>, vector<576x8xf32> -> vector<576x8xf32>
    %4 = vector.extract_strided_slice %3 {offsets = [0, 0], sizes = [64, 8], strides = [1, 1]} : vector<576x8xf32> to vector<64x8xf32>
    %5 = vector.extract_strided_slice %3 {offsets = [64, 0], sizes = [64, 8], strides = [1, 1]} : vector<576x8xf32> to vector<64x8xf32>
    %6 = vector.extract_strided_slice %3 {offsets = [128, 0], sizes = [64, 8], strides = [1, 1]} : vector<576x8xf32> to vector<64x8xf32>
    %7 = vector.extract_strided_slice %3 {offsets = [192, 0], sizes = [64, 8], strides = [1, 1]} : vector<576x8xf32> to vector<64x8xf32>
    %8 = vector.extract_strided_slice %3 {offsets = [256, 0], sizes = [64, 8], strides = [1, 1]} : vector<576x8xf32> to vector<64x8xf32>
    %9 = vector.extract_strided_slice %3 {offsets = [320, 0], sizes = [64, 8], strides = [1, 1]} : vector<576x8xf32> to vector<64x8xf32>
    %10 = vector.extract_strided_slice %3 {offsets = [384, 0], sizes = [64, 8], strides = [1, 1]} : vector<576x8xf32> to vector<64x8xf32>
    %11 = vector.extract_strided_slice %3 {offsets = [448, 0], sizes = [64, 8], strides = [1, 1]} : vector<576x8xf32> to vector<64x8xf32>
    %12 = vector.extract_strided_slice %3 {offsets = [512, 0], sizes = [64, 8], strides = [1, 1]} : vector<576x8xf32> to vector<64x8xf32>
    %13 = tpu.concatenate %4, %5, %6, %7, %8, %9, %10, %11, %12 in 1 : vector<64x8xf32>, vector<64x8xf32>, vector<64x8xf32>, vector<64x8xf32>, vector<64x8xf32>, vector<64x8xf32>, vector<64x8xf32>, vector<64x8xf32>, vector<64x8xf32> -> vector<64x72xf32>
    %14 = arith.truncf %13 : vector<64x72xf32> to vector<64x72xbf16>
    %c0_3 = arith.constant 0 : index
    %c0_4 = arith.constant 0 : index
    %15 = vector.load %arg3[%c0_3, %c0_4] : memref<72x32xbf16, #tpu.memory_space<vmem>>, vector<72x32xbf16>
    %cst_5 = arith.constant dense<0.000000e+00> : vector<64x32xf32>
    %16 = tpu.matmul %14, %15, %cst_5 {dimension_numbers = #tpu.dot_dimension_numbers<[1], [0], [0], [1], [0, 0, 1, 1], [], []>} : vector<64x72xbf16>, vector<72x32xbf16>, vector<64x32xf32> -> vector<64x32xf32>
    %cst_6 = arith.constant dense<0.000000e+00> : vector<32xf32>
    %17 = vector.multi_reduction <add>, %16, %cst_6 [0] : vector<64x32xf32> to vector<32xf32>
    %18 = vector.shape_cast %17 : vector<32xf32> to vector<1x32xf32>
    %cst_7 = arith.constant 6.400000e+01 : f32
    %19 = vector.broadcast %cst_7 : f32 to vector<1x32xf32>
    %20 = arith.divf %18, %19 : vector<1x32xf32>
    %21 = vector.broadcast %20 : vector<1x32xf32> to vector<64x32xf32>
    %22 = arith.subf %16, %21 : vector<64x32xf32>
    %23 = arith.mulf %22, %22 : vector<64x32xf32>
    %cst_8 = arith.constant dense<0.000000e+00> : vector<32xf32>
    %24 = vector.multi_reduction <add>, %23, %cst_8 [0] : vector<64x32xf32> to vector<32xf32>
    %25 = vector.shape_cast %24 : vector<32xf32> to vector<1x32xf32>
    %cst_9 = arith.constant 6.400000e+01 : f32
    %26 = vector.broadcast %cst_9 : f32 to vector<1x32xf32>
    %27 = arith.divf %25, %26 : vector<1x32xf32>
    %cst_10 = arith.constant 9.99999974E-6 : f32
    %28 = vector.broadcast %cst_10 : f32 to vector<1x32xf32>
    %29 = arith.addf %27, %28 : vector<1x32xf32>
    %30 = math.rsqrt %29 : vector<1x32xf32>
    %31 = vector.broadcast %30 : vector<1x32xf32> to vector<64x32xf32>
    %32 = arith.mulf %22, %31 : vector<64x32xf32>
    %cst_11 = arith.constant 0.000000e+00 : f32
    %33 = vector.broadcast %cst_11 : f32 to vector<64x32xf32>
    %34 = arith.cmpf oge, %32, %33 : vector<64x32xf32>
    %cst_12 = arith.constant 0.00999999977 : f32
    %35 = vector.broadcast %cst_12 : f32 to vector<64x32xf32>
    %36 = arith.mulf %32, %35 : vector<64x32xf32>
    %37 = arith.select %34, %32, %36 : vector<64x32xi1>, vector<64x32xf32>
    %c0_13 = arith.constant 0 : index
    %c0_14 = arith.constant 0 : index
    %38 = vector.load %arg4[%c0_13, %c0_14] : memref<144x64xbf16, #tpu.memory_space<vmem>>, vector<144x64xbf16>
    %39 = arith.truncf %37 : vector<64x32xf32> to vector<64x32xbf16>
    %cst_15 = arith.constant dense<0.000000e+00> : vector<144x32xf32>
    %40 = tpu.matmul %38, %39, %cst_15 {dimension_numbers = #tpu.dot_dimension_numbers<[1], [0], [0], [1], [0, 0, 1, 1], [], []>} : vector<144x64xbf16>, vector<64x32xbf16>, vector<144x32xf32> -> vector<144x32xf32>
    %41 = vector.extract_strided_slice %40 {offsets = [0, 0], sizes = [16, 32], strides = [1, 1]} : vector<144x32xf32> to vector<16x32xf32>
    %42 = vector.extract_strided_slice %40 {offsets = [16, 0], sizes = [16, 32], strides = [1, 1]} : vector<144x32xf32> to vector<16x32xf32>
    %43 = vector.extract_strided_slice %40 {offsets = [32, 0], sizes = [16, 32], strides = [1, 1]} : vector<144x32xf32> to vector<16x32xf32>
    %44 = vector.extract_strided_slice %40 {offsets = [48, 0], sizes = [16, 32], strides = [1, 1]} : vector<144x32xf32> to vector<16x32xf32>
    %45 = vector.extract_strided_slice %40 {offsets = [64, 0], sizes = [16, 32], strides = [1, 1]} : vector<144x32xf32> to vector<16x32xf32>
    %46 = vector.extract_strided_slice %40 {offsets = [80, 0], sizes = [16, 32], strides = [1, 1]} : vector<144x32xf32> to vector<16x32xf32>
    %47 = vector.extract_strided_slice %40 {offsets = [96, 0], sizes = [16, 32], strides = [1, 1]} : vector<144x32xf32> to vector<16x32xf32>
    %48 = vector.extract_strided_slice %40 {offsets = [112, 0], sizes = [16, 32], strides = [1, 1]} : vector<144x32xf32> to vector<16x32xf32>
    %49 = vector.extract_strided_slice %40 {offsets = [128, 0], sizes = [16, 32], strides = [1, 1]} : vector<144x32xf32> to vector<16x32xf32>
    %50 = tpu.concatenate %41, %42, %43, %44, %45, %46, %47, %48, %49 in 1 : vector<16x32xf32>, vector<16x32xf32>, vector<16x32xf32>, vector<16x32xf32>, vector<16x32xf32>, vector<16x32xf32>, vector<16x32xf32>, vector<16x32xf32>, vector<16x32xf32> -> vector<16x288xf32>
    %51 = arith.truncf %50 : vector<16x288xf32> to vector<16x288xbf16>
    %c0_16 = arith.constant 0 : index
    %c0_17 = arith.constant 0 : index
    %52 = vector.load %arg5[%c0_16, %c0_17] : memref<288x64xbf16, #tpu.memory_space<vmem>>, vector<288x64xbf16>
    %cst_18 = arith.constant dense<0.000000e+00> : vector<16x64xf32>
    %53 = tpu.matmul %51, %52, %cst_18 {dimension_numbers = #tpu.dot_dimension_numbers<[1], [0], [0], [1], [0, 0, 1, 1], [], []>} : vector<16x288xbf16>, vector<288x64xbf16>, vector<16x64xf32> -> vector<16x64xf32>
    %cst_19 = arith.constant dense<0.000000e+00> : vector<64xf32>
    %54 = vector.multi_reduction <add>, %53, %cst_19 [0] : vector<16x64xf32> to vector<64xf32>
    %55 = vector.shape_cast %54 : vector<64xf32> to vector<1x64xf32>
    %cst_20 = arith.constant 1.600000e+01 : f32
    %56 = vector.broadcast %cst_20 : f32 to vector<1x64xf32>
    %57 = arith.divf %55, %56 : vector<1x64xf32>
    %58 = vector.broadcast %57 : vector<1x64xf32> to vector<16x64xf32>
    %59 = arith.subf %53, %58 : vector<16x64xf32>
    %60 = arith.mulf %59, %59 : vector<16x64xf32>
    %cst_21 = arith.constant dense<0.000000e+00> : vector<64xf32>
    %61 = vector.multi_reduction <add>, %60, %cst_21 [0] : vector<16x64xf32> to vector<64xf32>
    %62 = vector.shape_cast %61 : vector<64xf32> to vector<1x64xf32>
    %cst_22 = arith.constant 1.600000e+01 : f32
    %63 = vector.broadcast %cst_22 : f32 to vector<1x64xf32>
    %64 = arith.divf %62, %63 : vector<1x64xf32>
    %cst_23 = arith.constant 9.99999974E-6 : f32
    %65 = vector.broadcast %cst_23 : f32 to vector<1x64xf32>
    %66 = arith.addf %64, %65 : vector<1x64xf32>
    %67 = math.rsqrt %66 : vector<1x64xf32>
    %68 = vector.broadcast %67 : vector<1x64xf32> to vector<16x64xf32>
    %69 = arith.mulf %59, %68 : vector<16x64xf32>
    %cst_24 = arith.constant 0.000000e+00 : f32
    %70 = vector.broadcast %cst_24 : f32 to vector<16x64xf32>
    %71 = arith.cmpf oge, %69, %70 : vector<16x64xf32>
    %cst_25 = arith.constant 0.00999999977 : f32
    %72 = vector.broadcast %cst_25 : f32 to vector<16x64xf32>
    %73 = arith.mulf %69, %72 : vector<16x64xf32>
    %74 = arith.select %71, %69, %73 : vector<16x64xi1>, vector<16x64xf32>
    %75 = vector.extract_strided_slice %74 {offsets = [0, 0], sizes = [1, 64], strides = [1, 1]} : vector<16x64xf32> to vector<1x64xf32>
    %76 = vector.extract_strided_slice %74 {offsets = [1, 0], sizes = [1, 64], strides = [1, 1]} : vector<16x64xf32> to vector<1x64xf32>
    %77 = vector.extract_strided_slice %74 {offsets = [2, 0], sizes = [1, 64], strides = [1, 1]} : vector<16x64xf32> to vector<1x64xf32>
    %78 = vector.extract_strided_slice %74 {offsets = [3, 0], sizes = [1, 64], strides = [1, 1]} : vector<16x64xf32> to vector<1x64xf32>
    %79 = vector.extract_strided_slice %74 {offsets = [4, 0], sizes = [1, 64], strides = [1, 1]} : vector<16x64xf32> to vector<1x64xf32>
    %80 = vector.extract_strided_slice %74 {offsets = [5, 0], sizes = [1, 64], strides = [1, 1]} : vector<16x64xf32> to vector<1x64xf32>
    %81 = vector.extract_strided_slice %74 {offsets = [6, 0], sizes = [1, 64], strides = [1, 1]} : vector<16x64xf32> to vector<1x64xf32>
    %82 = vector.extract_strided_slice %74 {offsets = [7, 0], sizes = [1, 64], strides = [1, 1]} : vector<16x64xf32> to vector<1x64xf32>
    %83 = vector.extract_strided_slice %74 {offsets = [8, 0], sizes = [1, 64], strides = [1, 1]} : vector<16x64xf32> to vector<1x64xf32>
    %84 = vector.extract_strided_slice %74 {offsets = [9, 0], sizes = [1, 64], strides = [1, 1]} : vector<16x64xf32> to vector<1x64xf32>
    %85 = vector.extract_strided_slice %74 {offsets = [10, 0], sizes = [1, 64], strides = [1, 1]} : vector<16x64xf32> to vector<1x64xf32>
    %86 = vector.extract_strided_slice %74 {offsets = [11, 0], sizes = [1, 64], strides = [1, 1]} : vector<16x64xf32> to vector<1x64xf32>
    %87 = vector.extract_strided_slice %74 {offsets = [12, 0], sizes = [1, 64], strides = [1, 1]} : vector<16x64xf32> to vector<1x64xf32>
    %88 = vector.extract_strided_slice %74 {offsets = [13, 0], sizes = [1, 64], strides = [1, 1]} : vector<16x64xf32> to vector<1x64xf32>
    %89 = vector.extract_strided_slice %74 {offsets = [14, 0], sizes = [1, 64], strides = [1, 1]} : vector<16x64xf32> to vector<1x64xf32>
    %90 = vector.extract_strided_slice %74 {offsets = [15, 0], sizes = [1, 64], strides = [1, 1]} : vector<16x64xf32> to vector<1x64xf32>
    %91 = tpu.concatenate %75, %76, %77, %78, %79, %80, %81, %82, %83, %84, %85, %86, %87, %88, %89, %90 in 1 : vector<1x64xf32>, vector<1x64xf32>, vector<1x64xf32>, vector<1x64xf32>, vector<1x64xf32>, vector<1x64xf32>, vector<1x64xf32>, vector<1x64xf32>, vector<1x64xf32>, vector<1x64xf32>, vector<1x64xf32>, vector<1x64xf32>, vector<1x64xf32>, vector<1x64xf32>, vector<1x64xf32>, vector<1x64xf32> -> vector<1x1024xf32>
    %92 = arith.truncf %91 : vector<1x1024xf32> to vector<1x1024xbf16>
    %c0_26 = arith.constant 0 : index
    %c0_27 = arith.constant 0 : index
    %93 = vector.load %arg6[%c0_26, %c0_27] : memref<1024x64xbf16, #tpu.memory_space<vmem>>, vector<1024x64xbf16>
    %cst_28 = arith.constant dense<0.000000e+00> : vector<1x64xf32>
    %94 = tpu.matmul %92, %93, %cst_28 {dimension_numbers = #tpu.dot_dimension_numbers<[1], [0], [0], [1], [0, 0, 1, 1], [], []>} : vector<1x1024xbf16>, vector<1024x64xbf16>, vector<1x64xf32> -> vector<1x64xf32>
    %c0_29 = arith.constant 0 : index
    %c0_30 = arith.constant 0 : index
    %95 = vector.load %arg7[%c0_29, %c0_30] : memref<1x64xf32, #tpu.memory_space<vmem>>, vector<1x64xf32>
    tpu.vector_store %arg7[%c0_29, %c0_30], %94 {strides = array<i32>} : memref<1x64xf32, #tpu.memory_space<vmem>>, vector<1x64xf32>,
    return
  }
  func.func @transform_0(%arg0: i32) -> (i32, i32) {
    %c0_i32 = arith.constant 0 : i32
    %c0_i32_0 = arith.constant 0 : i32
    %c0_i32_1 = arith.constant 0 : i32
    return %c0_i32, %c0_i32_0 : i32, i32
  }
  func.func @transform_1(%arg0: i32) -> (i32, i32) {
    %c0_i32 = arith.constant 0 : i32
    %c0_i32_0 = arith.constant 0 : i32
    %c0_i32_1 = arith.constant 0 : i32
    return %c0_i32, %c0_i32_0 : i32, i32
  }
  func.func @transform_2(%arg0: i32) -> (i32, i32) {
    %c0_i32 = arith.constant 0 : i32
    %c0_i32_0 = arith.constant 0 : i32
    %c0_i32_1 = arith.constant 0 : i32
    return %c0_i32, %c0_i32_0 : i32, i32
  }
  func.func @transform_3(%arg0: i32) -> (i32, i32) {
    %c0_i32 = arith.constant 0 : i32
    %c0_i32_0 = arith.constant 0 : i32
    %c0_i32_1 = arith.constant 0 : i32
    return %c0_i32, %c0_i32_0 : i32, i32
  }
  func.func @transform_4(%arg0: i32) -> (i32, i32) {
    %c0_i32 = arith.constant 0 : i32
    %c0_i32_0 = arith.constant 0 : i32
    %c0_i32_1 = arith.constant 0 : i32
    return %c0_i32, %c0_i32_0 : i32, i32
  }
  func.func @transform_5(%arg0: i32) -> (i32, i32) {
    %c0_i32 = arith.constant 0 : i32
    %c0_i32_0 = arith.constant 0 : i32
    %c0_i32_1 = arith.constant 0 : i32
    return %c0_i32, %c0_i32_0 : i32, i32
  }
  func.func @transform_6(%arg0: i32) -> (i32, i32) {
    %c0_i32 = arith.constant 0 : i32
    %c0_i32_0 = arith.constant 0 : i32
    %c0_i32_1 = arith.constant 0 : i32
    return %c0_i32, %c0_i32_0 : i32, i32
  }
}

</mosaic_0001>

<llo_original>
// kernel: encoder_forward.1
$region0: #{encoder_forward.1}
  #allocation0 [shape = 'u32[]', space=smem, size = 0x4, offset = 0x4, fixed_abs, tag = 'smem constant byte address 0x4 - core index']
  #allocation1 [shape = 'u32[144,128]{1,0:T(1,128)}', space=vmem, size = 0x12000, scoped, tag = 'internal scratch']
  %s0 = inlined_call_operand.vmem [shape: f32[256,8], index: 0, kind: input, shape index: {}]
  %s1 = inlined_call_operand.vmem [shape: bf16[576,256], index: 1, kind: input, shape index: {}]
  %s2 = inlined_call_operand.vmem [shape: bf16[72,32], index: 2, kind: input, shape index: {}]
  %s3 = inlined_call_operand.vmem [shape: bf16[144,64], index: 3, kind: input, shape index: {}]
  %s4 = inlined_call_operand.vmem [shape: bf16[288,64], index: 4, kind: input, shape index: {}]
  %s5 = inlined_call_operand.vmem [shape: bf16[1024,64], index: 5, kind: input, shape index: {}]
  %s6 = inlined_call_operand.vmem [shape: f32[1,64], index: 6, kind: output, shape index: {}]
  %s7 = sld [smem:[#allocation0]]
  $region34: #{encoder_forward.1} parent=0
    _
  %s9 = ssub.s32 1, %s7
  %s10 = scalar_select 0, %s9, %s7
  // Predicated region
  $region2: #{encoder_forward.1} parent=0 // pred_check
    _
  $region3: #{encoder_forward.1} parent=0 // pred_check_branch
    %12 = sbr.rel (0) target = $region5
  $region4: #{encoder_forward.1} parent=0 // pred_region
    _
  $region5: #{encoder_forward.1} parent=0 // pred_fallthru
    _
  // Predicated region
  $region6: #{encoder_forward.1} parent=0 // pred_check
    _
  $region7: #{encoder_forward.1} parent=0 // pred_check_branch
    %14 = sbr.rel (0) target = $region9
  $region8: #{encoder_forward.1} parent=0 // pred_region
    _
  $region9: #{encoder_forward.1} parent=0 // pred_fallthru
    _
  // Predicated region
  $region10: #{encoder_forward.1} parent=0 // pred_check
    _
  $region11: #{encoder_forward.1} parent=0 // pred_check_branch
    %16 = sbr.rel (0) target = $region13
  $region12: #{encoder_forward.1} parent=0 // pred_region
    _
  $region13: #{encoder_forward.1} parent=0 // pred_fallthru
    _
  // Predicated region
  $region14: #{encoder_forward.1} parent=0 // pred_check
    _
  $region15: #{encoder_forward.1} parent=0 // pred_check_branch
    %18 = sbr.rel (0) target = $region17
  $region16: #{encoder_forward.1} parent=0 // pred_region
    _
  $region17: #{encoder_forward.1} parent=0 // pred_fallthru
    _
  // Predicated region
  $region18: #{encoder_forward.1} parent=0 // pred_check
    _
  $region19: #{encoder_forward.1} parent=0 // pred_check_branch
    %20 = sbr.rel (0) target = $region21
  $region20: #{encoder_forward.1} parent=0 // pred_region
    _
  $region21: #{encoder_forward.1} parent=0 // pred_fallthru
    _
  // Predicated region
  $region22: #{encoder_forward.1} parent=0 // pred_check
    _
  $region23: #{encoder_forward.1} parent=0 // pred_check_branch
    %22 = sbr.rel (0) target = $region25
  $region24: #{encoder_forward.1} parent=0 // pred_region
    _
  $region25: #{encoder_forward.1} parent=0 // pred_fallthru
    _
  %v24 = vld [vmem:[%s0] sm:$0xff]
  %v25 = vld [vmem:[%s0 + $0x8] sm:$0xff]
  %v26 = vld [vmem:[%s0 + $0x10] sm:$0xff]
  %v27 = vld [vmem:[%s0 + $0x18] sm:$0xff]
  %v28 = vld [vmem:[%s0 + $0x20] sm:$0xff]
  %v29 = vld [vmem:[%s0 + $0x28] sm:$0xff]
  %v30 = vld [vmem:[%s0 + $0x30] sm:$0xff]
  %v31 = vld [vmem:[%s0 + $0x38] sm:$0xff]
  %v32 = vld [vmem:[%s0 + $0x40] sm:$0xff]
  %v33 = vld [vmem:[%s0 + $0x48] sm:$0xff]
  %v34 = vld [vmem:[%s0 + $0x50] sm:$0xff]
  %v35 = vld [vmem:[%s0 + $0x58] sm:$0xff]
  %v36 = vld [vmem:[%s0 + $0x60] sm:$0xff]
  %v37 = vld [vmem:[%s0 + $0x68] sm:$0xff]
  %v38 = vld [vmem:[%s0 + $0x70] sm:$0xff]
  %v39 = vld [vmem:[%s0 + $0x78] sm:$0xff]
  %v40 = vld [vmem:[%s0 + $0x80] sm:$0xff]
  %v41 = vld [vmem:[%s0 + $0x88] sm:$0xff]
  %v42 = vld [vmem:[%s0 + $0x90] sm:$0xff]
  %v43 = vld [vmem:[%s0 + $0x98] sm:$0xff]
  %v44 = vld [vmem:[%s0 + $0xa0] sm:$0xff]
  %v45 = vld [vmem:[%s0 + $0xa8] sm:$0xff]
  %v46 = vld [vmem:[%s0 + $0xb0] sm:$0xff]
  %v47 = vld [vmem:[%s0 + $0xb8] sm:$0xff]
  %v48 = vld [vmem:[%s0 + $0xc0] sm:$0xff]
  %v49 = vld [vmem:[%s0 + $0xc8] sm:$0xff]
  %v50 = vld [vmem:[%s0 + $0xd0] sm:$0xff]
  %v51 = vld [vmem:[%s0 + $0xd8] sm:$0xff]
  %v52 = vld [vmem:[%s0 + $0xe0] sm:$0xff]
  %v53 = vld [vmem:[%s0 + $0xe8] sm:$0xff]
  %v54 = vld [vmem:[%s0 + $0xf0] sm:$0xff]
  %v55 = vld [vmem:[%s0 + $0xf8] sm:$0xff]
  %v56 = vld [vmem:[%s1] sm:$0xff]
  %v57 = vld [vmem:[%s1 + $0x8] sm:$0xff]
  %v58 = vld [vmem:[%s1 + $0x10] sm:$0xff]
  %v59 = vld [vmem:[%s1 + $0x18] sm:$0xff]
  %v60 = vld [vmem:[%s1 + $0x20] sm:$0xff]
  %v61 = vld [vmem:[%s1 + $0x28] sm:$0xff]
  %v62 = vld [vmem:[%s1 + $0x30] sm:$0xff]
  %v63 = vld [vmem:[%s1 + $0x38] sm:$0xff]
  %v64 = vld [vmem:[%s1 + $0x40] sm:$0xff]
  %v65 = vld [vmem:[%s1 + $0x48] sm:$0xff]
  %v66 = vld [vmem:[%s1 + $0x50] sm:$0xff]
  %v67 = vld [vmem:[%s1 + $0x58] sm:$0xff]
  %v68 = vld [vmem:[%s1 + $0x60] sm:$0xff]
  %v69 = vld [vmem:[%s1 + $0x68] sm:$0xff]
  %v70 = vld [vmem:[%s1 + $0x70] sm:$0xff]
  %v71 = vld [vmem:[%s1 + $0x78] sm:$0xff]
  %v72 = vld [vmem:[%s1 + $0x80] sm:$0xff]
  %v73 = vld [vmem:[%s1 + $0x88] sm:$0xff]
  %v74 = vld [vmem:[%s1 + $0x90] sm:$0xff]
  %v75 = vld [vmem:[%s1 + $0x98] sm:$0xff]
  %v76 = vld [vmem:[%s1 + $0xa0] sm:$0xff]
  %v77 = vld [vmem:[%s1 + $0xa8] sm:$0xff]
  %v78 = vld [vmem:[%s1 + $0xb0] sm:$0xff]
  %v79 = vld [vmem:[%s1 + $0xb8] sm:$0xff]
  %v80 = vld [vmem:[%s1 + $0xc0] sm:$0xff]
  %v81 = vld [vmem:[%s1 + $0xc8] sm:$0xff]
  %v82 = vld [vmem:[%s1 + $0xd0] sm:$0xff]
  %v83 = vld [vmem:[%s1 + $0xd8] sm:$0xff]
  %v84 = vld [vmem:[%s1 + $0xe0] sm:$0xff]
  %v85 = vld [vmem:[%s1 + $0xe8] sm:$0xff]
  %v86 = vld [vmem:[%s1 + $0xf0] sm:$0xff]
  %v87 = vld [vmem:[%s1 + $0xf8] sm:$0xff]
  %v88 = vld [vmem:[%s1 + $0x100] sm:$0xff]
  %v89 = vld [vmem:[%s1 + $0x108] sm:$0xff]
  %v90 = vld [vmem:[%s1 + $0x110] sm:$0xff]
  %v91 = vld [vmem:[%s1 + $0x118] sm:$0xff]
  %v92 = vld [vmem:[%s1 + $0x120] sm:$0xff]
  %v93 = vld [vmem:[%s1 + $0x128] sm:$0xff]
  %v94 = vld [vmem:[%s1 + $0x130] sm:$0xff]
  %v95 = vld [vmem:[%s1 + $0x138] sm:$0xff]
  %v96 = vld [vmem:[%s1 + $0x140] sm:$0xff]
  %v97 = vld [vmem:[%s1 + $0x148] sm:$0xff]
  %v98 = vld [vmem:[%s1 + $0x150] sm:$0xff]
  %v99 = vld [vmem:[%s1 + $0x158] sm:$0xff]
  %v100 = vld [vmem:[%s1 + $0x160] sm:$0xff]
  %v101 = vld [vmem:[%s1 + $0x168] sm:$0xff]
  %v102 = vld [vmem:[%s1 + $0x170] sm:$0xff]
  %v103 = vld [vmem:[%s1 + $0x178] sm:$0xff]
  %v104 = vld [vmem:[%s1 + $0x180] sm:$0xff]
  %v105 = vld [vmem:[%s1 + $0x188] sm:$0xff]
  %v106 = vld [vmem:[%s1 + $0x190] sm:$0xff]
  %v107 = vld [vmem:[%s1 + $0x198] sm:$0xff]
  %v108 = vld [vmem:[%s1 + $0x1a0] sm:$0xff]
  %v109 = vld [vmem:[%s1 + $0x1a8] sm:$0xff]
  %v110 = vld [vmem:[%s1 + $0x1b0] sm:$0xff]
  %v111 = vld [vmem:[%s1 + $0x1b8] sm:$0xff]
  %v112 = vld [vmem:[%s1 + $0x1c0] sm:$0xff]
  %v113 = vld [vmem:[%s1 + $0x1c8] sm:$0xff]
  %v114 = vld [vmem:[%s1 + $0x1d0] sm:$0xff]
  %v115 = vld [vmem:[%s1 + $0x1d8] sm:$0xff]
  %v116 = vld [vmem:[%s1 + $0x1e0] sm:$0xff]
  %v117 = vld [vmem:[%s1 + $0x1e8] sm:$0xff]
  %v118 = vld [vmem:[%s1 + $0x1f0] sm:$0xff]
  %v119 = vld [vmem:[%s1 + $0x1f8] sm:$0xff]
  %v120 = vld [vmem:[%s1 + $0x200] sm:$0xff]
  %v121 = vld [vmem:[%s1 + $0x208] sm:$0xff]
  %v122 = vld [vmem:[%s1 + $0x210] sm:$0xff]
  %v123 = vld [vmem:[%s1 + $0x218] sm:$0xff]
  %v124 = vld [vmem:[%s1 + $0x220] sm:$0xff]
  %v125 = vld [vmem:[%s1 + $0x228] sm:$0xff]
  %v126 = vld [vmem:[%s1 + $0x230] sm:$0xff]
  %v127 = vld [vmem:[%s1 + $0x238] sm:$0xff]
  %v128 = vpack.c.bf16 %v25, %v24
  %v129 = vpack.c.bf16 %v27, %v26
  %v130 = vpack.c.bf16 %v29, %v28
  %v131 = vpack.c.bf16 %v31, %v30
  %v132 = vpack.c.bf16 %v33, %v32
  %v133 = vpack.c.bf16 %v35, %v34
  %v134 = vpack.c.bf16 %v37, %v36
  %v135 = vpack.c.bf16 %v39, %v38
  %v136 = vpack.c.bf16 %v41, %v40
  %v137 = vpack.c.bf16 %v43, %v42
  %v138 = vpack.c.bf16 %v45, %v44
  %v139 = vpack.c.bf16 %v47, %v46
  %v140 = vpack.c.bf16 %v49, %v48
  %v141 = vpack.c.bf16 %v51, %v50
  %v142 = vpack.c.bf16 %v53, %v52
  %v143 = vpack.c.bf16 %v55, %v54
  %v216 = vunpack.c.l.b16 %v56
  %v217 = vunpack.c.h.b16 %v56
  %v218 = vunpack.c.l.b16 %v57
  %v219 = vunpack.c.h.b16 %v57
  %v220 = vunpack.c.l.b16 %v58
  %v221 = vunpack.c.h.b16 %v58
  %v222 = vunpack.c.l.b16 %v59
  %v223 = vunpack.c.h.b16 %v59
  %v224 = vunpack.c.l.b16 %v60
  %v225 = vunpack.c.h.b16 %v60
  %v226 = vunpack.c.l.b16 %v61
  %v227 = vunpack.c.h.b16 %v61
  %v228 = vunpack.c.l.b16 %v62
  %v229 = vunpack.c.h.b16 %v62
  %v230 = vunpack.c.l.b16 %v63
  %v231 = vunpack.c.h.b16 %v63
  %v232 = vunpack.c.l.b16 %v64
  %v233 = vunpack.c.h.b16 %v64
  %v234 = vunpack.c.l.b16 %v65
  %v235 = vunpack.c.h.b16 %v65
  %v236 = vunpack.c.l.b16 %v66
  %v237 = vunpack.c.h.b16 %v66
  %v238 = vunpack.c.l.b16 %v67
  %v239 = vunpack.c.h.b16 %v67
  %v240 = vunpack.c.l.b16 %v68
  %v241 = vunpack.c.h.b16 %v68
  %v242 = vunpack.c.l.b16 %v69
  %v243 = vunpack.c.h.b16 %v69
  %v244 = vunpack.c.l.b16 %v70
  %v245 = vunpack.c.h.b16 %v70
  %v246 = vunpack.c.l.b16 %v71
  %v247 = vunpack.c.h.b16 %v71
  %v248 = vunpack.c.l.b16 %v72
  %v249 = vunpack.c.h.b16 %v72
  %v250 = vunpack.c.l.b16 %v73
  %v251 = vunpack.c.h.b16 %v73
  %v252 = vunpack.c.l.b16 %v74
  %v253 = vunpack.c.h.b16 %v74
  %v254 = vunpack.c.l.b16 %v75
  %v255 = vunpack.c.h.b16 %v75
  %v256 = vunpack.c.l.b16 %v76
  %v257 = vunpack.c.h.b16 %v76
  %v258 = vunpack.c.l.b16 %v77
  %v259 = vunpack.c.h.b16 %v77
  %v260 = vunpack.c.l.b16 %v78
  %v261 = vunpack.c.h.b16 %v78
  %v262 = vunpack.c.l.b16 %v79
  %v263 = vunpack.c.h.b16 %v79
  %v264 = vunpack.c.l.b16 %v80
  %v265 = vunpack.c.h.b16 %v80
  %v266 = vunpack.c.l.b16 %v81
  %v267 = vunpack.c.h.b16 %v81
  %v268 = vunpack.c.l.b16 %v82
  %v269 = vunpack.c.h.b16 %v82
  %v270 = vunpack.c.l.b16 %v83
  %v271 = vunpack.c.h.b16 %v83
  %v272 = vunpack.c.l.b16 %v84
  %v273 = vunpack.c.h.b16 %v84
  %v274 = vunpack.c.l.b16 %v85
  %v275 = vunpack.c.h.b16 %v85
  %v276 = vunpack.c.l.b16 %v86
  %v277 = vunpack.c.h.b16 %v86
  %v278 = vunpack.c.l.b16 %v87
  %v279 = vunpack.c.h.b16 %v87
  %v280 = vunpack.c.l.b16 %v88
  %v281 = vunpack.c.h.b16 %v88
  %v282 = vunpack.c.l.b16 %v89
  %v283 = vunpack.c.h.b16 %v89
  %v284 = vunpack.c.l.b16 %v90
  %v285 = vunpack.c.h.b16 %v90
  %v286 = vunpack.c.l.b16 %v91
  %v287 = vunpack.c.h.b16 %v91
  %v288 = vunpack.c.l.b16 %v92
  %v289 = vunpack.c.h.b16 %v92
  %v290 = vunpack.c.l.b16 %v93
  %v291 = vunpack.c.h.b16 %v93
  %v292 = vunpack.c.l.b16 %v94
  %v293 = vunpack.c.h.b16 %v94
  %v294 = vunpack.c.l.b16 %v95
  %v295 = vunpack.c.h.b16 %v95
  %v296 = vunpack.c.l.b16 %v96
  %v297 = vunpack.c.h.b16 %v96
  %v298 = vunpack.c.l.b16 %v97
  %v299 = vunpack.c.h.b16 %v97
  %v300 = vunpack.c.l.b16 %v98
  %v301 = vunpack.c.h.b16 %v98
  %v302 = vunpack.c.l.b16 %v99
  %v303 = vunpack.c.h.b16 %v99
  %v304 = vunpack.c.l.b16 %v100
  %v305 = vunpack.c.h.b16 %v100
  %v306 = vunpack.c.l.b16 %v101
  %v307 = vunpack.c.h.b16 %v101
  %v308 = vunpack.c.l.b16 %v102
  %v309 = vunpack.c.h.b16 %v102
  %v310 = vunpack.c.l.b16 %v103
  %v311 = vunpack.c.h.b16 %v103
  %v312 = vunpack.c.l.b16 %v104
  %v313 = vunpack.c.h.b16 %v104
  %v314 = vunpack.c.l.b16 %v105
  %v315 = vunpack.c.h.b16 %v105
  %v316 = vunpack.c.l.b16 %v106
  %v317 = vunpack.c.h.b16 %v106
  %v318 = vunpack.c.l.b16 %v107
  %v319 = vunpack.c.h.b16 %v107
  %v320 = vunpack.c.l.b16 %v108
  %v321 = vunpack.c.h.b16 %v108
  %v322 = vunpack.c.l.b16 %v109
  %v323 = vunpack.c.h.b16 %v109
  %v324 = vunpack.c.l.b16 %v110
  %v325 = vunpack.c.h.b16 %v110
  %v326 = vunpack.c.l.b16 %v111
  %v327 = vunpack.c.h.b16 %v111
  %v328 = vunpack.c.l.b16 %v112
  %v329 = vunpack.c.h.b16 %v112
  %v330 = vunpack.c.l.b16 %v113
  %v331 = vunpack.c.h.b16 %v113
  %v332 = vunpack.c.l.b16 %v114
  %v333 = vunpack.c.h.b16 %v114
  %v334 = vunpack.c.l.b16 %v115
  %v335 = vunpack.c.h.b16 %v115
  %v336 = vunpack.c.l.b16 %v116
  %v337 = vunpack.c.h.b16 %v116
  %v338 = vunpack.c.l.b16 %v117
  %v339 = vunpack.c.h.b16 %v117
  %v340 = vunpack.c.l.b16 %v118
  %v341 = vunpack.c.h.b16 %v118
  %v342 = vunpack.c.l.b16 %v119
  %v343 = vunpack.c.h.b16 %v119
  %v344 = vunpack.c.l.b16 %v120
  %v345 = vunpack.c.h.b16 %v120
  %v346 = vunpack.c.l.b16 %v121
  %v347 = vunpack.c.h.b16 %v121
  %v348 = vunpack.c.l.b16 %v122
  %v349 = vunpack.c.h.b16 %v122
  %v350 = vunpack.c.l.b16 %v123
  %v351 = vunpack.c.h.b16 %v123
  %v352 = vunpack.c.l.b16 %v124
  %v353 = vunpack.c.h.b16 %v124
  %v354 = vunpack.c.l.b16 %v125
  %v355 = vunpack.c.h.b16 %v125
  %v356 = vunpack.c.l.b16 %v126
  %v357 = vunpack.c.h.b16 %v126
  %v358 = vunpack.c.l.b16 %v127
  %v359 = vunpack.c.h.b16 %v127
  %v360 = vpack.c.b16 %v218, %v216
  %v361 = vpack.c.b16 %v219, %v217
  %v362 = vpack.c.b16 %v222, %v220
  %v363 = vpack.c.b16 %v223, %v221
  %v364 = vpack.c.b16 %v226, %v224
  %v365 = vpack.c.b16 %v227, %v225
  %v366 = vpack.c.b16 %v230, %v228
  %v367 = vpack.c.b16 %v231, %v229
  %v368 = vpack.c.b16 %v234, %v232
  %v369 = vpack.c.b16 %v235, %v233
  %v370 = vpack.c.b16 %v238, %v236
  %v371 = vpack.c.b16 %v239, %v237
  %v372 = vpack.c.b16 %v242, %v240
  %v373 = vpack.c.b16 %v243, %v241
  %v374 = vpack.c.b16 %v246, %v244
  %v375 = vpack.c.b16 %v247, %v245
  %v376 = vpack.c.b16 %v250, %v248
  %v377 = vpack.c.b16 %v251, %v249
  %v378 = vpack.c.b16 %v254, %v252
  %v379 = vpack.c.b16 %v255, %v253
  %v380 = vpack.c.b16 %v258, %v256
  %v381 = vpack.c.b16 %v259, %v257
  %v382 = vpack.c.b16 %v262, %v260
  %v383 = vpack.c.b16 %v263, %v261
  %v384 = vpack.c.b16 %v266, %v264
  %v385 = vpack.c.b16 %v267, %v265
  %v386 = vpack.c.b16 %v270, %v268
  %v387 = vpack.c.b16 %v271, %v269
  %v388 = vpack.c.b16 %v274, %v272
  %v389 = vpack.c.b16 %v275, %v273
  %v390 = vpack.c.b16 %v278, %v276
  %v391 = vpack.c.b16 %v279, %v277
  %v392 = vpack.c.b16 %v282, %v280
  %v393 = vpack.c.b16 %v283, %v281
  %v394 = vpack.c.b16 %v286, %v284
  %v395 = vpack.c.b16 %v287, %v285
  %v396 = vpack.c.b16 %v290, %v288
  %v397 = vpack.c.b16 %v291, %v289
  %v398 = vpack.c.b16 %v294, %v292
  %v399 = vpack.c.b16 %v295, %v293
  %v400 = vpack.c.b16 %v298, %v296
  %v401 = vpack.c.b16 %v299, %v297
  %v402 = vpack.c.b16 %v302, %v300
  %v403 = vpack.c.b16 %v303, %v301
  %v404 = vpack.c.b16 %v306, %v304
  %v405 = vpack.c.b16 %v307, %v305
  %v406 = vpack.c.b16 %v310, %v308
  %v407 = vpack.c.b16 %v311, %v309
  %v408 = vpack.c.b16 %v314, %v312
  %v409 = vpack.c.b16 %v315, %v313
  %v410 = vpack.c.b16 %v318, %v316
  %v411 = vpack.c.b16 %v319, %v317
  %v412 = vpack.c.b16 %v322, %v320
  %v413 = vpack.c.b16 %v323, %v321
  %v414 = vpack.c.b16 %v326, %v324
  %v415 = vpack.c.b16 %v327, %v325
  %v416 = vpack.c.b16 %v330, %v328
  %v417 = vpack.c.b16 %v331, %v329
  %v418 = vpack.c.b16 %v334, %v332
  %v419 = vpack.c.b16 %v335, %v333
  %v420 = vpack.c.b16 %v338, %v336
  %v421 = vpack.c.b16 %v339, %v337
  %v422 = vpack.c.b16 %v342, %v340
  %v423 = vpack.c.b16 %v343, %v341
  %v424 = vpack.c.b16 %v346, %v344
  %v425 = vpack.c.b16 %v347, %v345
  %v426 = vpack.c.b16 %v350, %v348
  %v427 = vpack.c.b16 %v351, %v349
  %v428 = vpack.c.b16 %v354, %v352
  %v429 = vpack.c.b16 %v355, %v353
  %v430 = vpack.c.b16 %v358, %v356
  %v431 = vpack.c.b16 %v359, %v357
  %504 = vmatprep.subr.bf16.mxu0 0
  %505 = vmatpush1.bf16.msra.mxu0 %v128
  %506 = vmatprep.subr.bf16.mxu0 0
  %507 = vmatpush1.bf16.msra.mxu0 %v129
  %508 = vmatprep.subr.bf16.mxu0 0
  %509 = vmatpush1.bf16.msra.mxu0 %v130
  %510 = vmatprep.subr.bf16.mxu0 0
  %511 = vmatpush1.bf16.msra.mxu0 %v131
  %512 = vmatprep.subr.bf16.mxu0 0
  %513 = vmatpush1.bf16.msra.mxu0 %v132
  %514 = vmatprep.subr.bf16.mxu0 0
  %515 = vmatpush1.bf16.msra.mxu0 %v133
  %516 = vmatprep.subr.bf16.mxu0 0
  %517 = vmatpush1.bf16.msra.mxu0 %v134
  %518 = vmatprep.subr.bf16.mxu0 0
  %519 = vmatpush1.bf16.msra.mxu0 %v135
  %520 = vmatprep.subr.bf16.mxu0 0
  %521 = vmatpush1.bf16.msra.mxu0 %v136
  %522 = vmatprep.subr.bf16.mxu0 0
  %523 = vmatpush1.bf16.msra.mxu0 %v137
  %524 = vmatprep.subr.bf16.mxu0 0
  %525 = vmatpush1.bf16.msra.mxu0 %v138
  %526 = vmatprep.subr.bf16.mxu0 0
  %527 = vmatpush1.bf16.msra.mxu0 %v139
  %528 = vmatprep.subr.bf16.mxu0 0
  %529 = vmatpush1.bf16.msra.mxu0 %v140
  %530 = vmatprep.subr.bf16.mxu0 0
  %531 = vmatpush1.bf16.msra.mxu0 %v141
  %532 = vmatprep.subr.bf16.mxu0 0
  %533 = vmatpush1.bf16.msra.mxu0 %v142
  %534 = vmatprep.subr.bf16.mxu0 0
  %535 = vmatpush1.bf16.msra.mxu0 %v143
  %536 = vmatprep.mubr.bf16.mxu0 %v361
  %537 = vmatmul.mubr.bf16.gmra.mrb[0].mxu0 %v360
  %v538 = vpop.f32.mrb[0].mxu0
  %v539 = vadd.f32 0.0, %v538
  %v540 = vpop.f32.mrb[0].mxu0
  %v541 = vpop.f32.mrb[0].mxu0
  %v542 = vadd.f32 0.0, %v541
  %v543 = vpop.f32.mrb[0].mxu0
  %544 = vmatprep.mubr.bf16.mxu0 %v363
  %545 = vmatmul.mubr.bf16.gmra.mrb[0].mxu0 %v362
  %v546 = vpop.f32.mrb[0].mxu0
  %v547 = vadd.f32 0.0, %v546
  %v548 = vpop.f32.mrb[0].mxu0
  %v549 = vpop.f32.mrb[0].mxu0
  %v550 = vadd.f32 0.0, %v549
  %v551 = vpop.f32.mrb[0].mxu0
  %552 = vmatprep.mubr.bf16.mxu0 %v365
  %553 = vmatmul.mubr.bf16.gmra.mrb[0].mxu0 %v364
  %v554 = vpop.f32.mrb[0].mxu0
  %v555 = vadd.f32 0.0, %v554
  %v556 = vpop.f32.mrb[0].mxu0
  %v557 = vpop.f32.mrb[0].mxu0
  %v558 = vadd.f32 0.0, %v557
  %v559 = vpop.f32.mrb[0].mxu0
  %560 = vmatprep.mubr.bf16.mxu0 %v367
  %561 = vmatmul.mubr.bf16.gmra.mrb[0].mxu0 %v366
  %v562 = vpop.f32.mrb[0].mxu0
  %v563 = vadd.f32 0.0, %v562
  %v564 = vpop.f32.mrb[0].mxu0
  %v565 = vpop.f32.mrb[0].mxu0
  %v566 = vadd.f32 0.0, %v565
  %v567 = vpop.f32.mrb[0].mxu0
  %568 = vmatprep.mubr.bf16.mxu0 %v369
  %569 = vmatmul.mubr.bf16.gmra.mrb[0].mxu0 %v368
  %v570 = vpop.f32.mrb[0].mxu0
  %v571 = vadd.f32 0.0, %v570
  %v572 = vpop.f32.mrb[0].mxu0
  %v573 = vpop.f32.mrb[0].mxu0
  %v574 = vadd.f32 0.0, %v573
  %v575 = vpop.f32.mrb[0].mxu0
  %576 = vmatprep.mubr.bf16.mxu0 %v371
  %577 = vmatmul.mubr.bf16.gmra.mrb[0].mxu0 %v370
  %v578 = vpop.f32.mrb[0].mxu0
  %v579 = vadd.f32 0.0, %v578
  %v580 = vpop.f32.mrb[0].mxu0
  %v581 = vpop.f32.mrb[0].mxu0
  %v582 = vadd.f32 0.0, %v581
  %v583 = vpop.f32.mrb[0].mxu0
  %584 = vmatprep.mubr.bf16.mxu0 %v373
  %585 = vmatmul.mubr.bf16.gmra.mrb[0].mxu0 %v372
  %v586 = vpop.f32.mrb[0].mxu0
  %v587 = vadd.f32 0.0, %v586
  %v588 = vpop.f32.mrb[0].mxu0
  %v589 = vpop.f32.mrb[0].mxu0
  %v590 = vadd.f32 0.0, %v589
  %v591 = vpop.f32.mrb[0].mxu0
  %592 = vmatprep.mubr.bf16.mxu0 %v375
  %593 = vmatmul.mubr.bf16.gmra.mrb[0].mxu0 %v374
  %v594 = vpop.f32.mrb[0].mxu0
  %v595 = vadd.f32 0.0, %v594
  %v596 = vpop.f32.mrb[0].mxu0
  %v597 = vpop.f32.mrb[0].mxu0
  %v598 = vadd.f32 0.0, %v597
  %v599 = vpop.f32.mrb[0].mxu0
  %600 = vmatprep.mubr.bf16.mxu0 %v377
  %601 = vmatmul.mubr.bf16.gmra.mrb[0].mxu0 %v376
  %v602 = vpop.f32.mrb[0].mxu0
  %v603 = vadd.f32 0.0, %v602
  %v604 = vpop.f32.mrb[0].mxu0
  %v605 = vpop.f32.mrb[0].mxu0
  %v606 = vadd.f32 0.0, %v605
  %v607 = vpop.f32.mrb[0].mxu0
  %608 = vmatprep.mubr.bf16.mxu0 %v379
  %609 = vmatmul.mubr.bf16.gmra.mrb[0].mxu0 %v378
  %v610 = vpop.f32.mrb[0].mxu0
  %v611 = vadd.f32 0.0, %v610
  %v612 = vpop.f32.mrb[0].mxu0
  %v613 = vpop.f32.mrb[0].mxu0
  %v614 = vadd.f32 0.0, %v613
  %v615 = vpop.f32.mrb[0].mxu0
  %616 = vmatprep.mubr.bf16.mxu0 %v381
  %617 = vmatmul.mubr.bf16.gmra.mrb[0].mxu0 %v380
  %v618 = vpop.f32.mrb[0].mxu0
  %v619 = vadd.f32 0.0, %v618
  %v620 = vpop.f32.mrb[0].mxu0
  %v621 = vpop.f32.mrb[0].mxu0
  %v622 = vadd.f32 0.0, %v621
  %v623 = vpop.f32.mrb[0].mxu0
  %624 = vmatprep.mubr.bf16.mxu0 %v383
  %625 = vmatmul.mubr.bf16.gmra.mrb[0].mxu0 %v382
  %v626 = vpop.f32.mrb[0].mxu0
  %v627 = vadd.f32 0.0, %v626
  %v628 = vpop.f32.mrb[0].mxu0
  %v629 = vpop.f32.mrb[0].mxu0
  %v630 = vadd.f32 0.0, %v629
  %v631 = vpop.f32.mrb[0].mxu0
  %632 = vmatprep.mubr.bf16.mxu0 %v385
  %633 = vmatmul.mubr.bf16.gmra.mrb[0].mxu0 %v384
  %v634 = vpop.f32.mrb[0].mxu0
  %v635 = vadd.f32 0.0, %v634
  %v636 = vpop.f32.mrb[0].mxu0
  %v637 = vpop.f32.mrb[0].mxu0
  %v638 = vadd.f32 0.0, %v637
  %v639 = vpop.f32.mrb[0].mxu0
  %640 = vmatprep.mubr.bf16.mxu0 %v387
  %641 = vmatmul.mubr.bf16.gmra.mrb[0].mxu0 %v386
  %v642 = vpop.f32.mrb[0].mxu0
  %v643 = vadd.f32 0.0, %v642
  %v644 = vpop.f32.mrb[0].mxu0
  %v645 = vpop.f32.mrb[0].mxu0
  %v646 = vadd.f32 0.0, %v645
  %v647 = vpop.f32.mrb[0].mxu0
  %648 = vmatprep.mubr.bf16.mxu0 %v389
  %649 = vmatmul.mubr.bf16.gmra.mrb[0].mxu0 %v388
  %v650 = vpop.f32.mrb[0].mxu0
  %v651 = vadd.f32 0.0, %v650
  %v652 = vpop.f32.mrb[0].mxu0
  %v653 = vpop.f32.mrb[0].mxu0
  %v654 = vadd.f32 0.0, %v653
  %v655 = vpop.f32.mrb[0].mxu0
  %656 = vmatprep.mubr.bf16.mxu0 %v391
  %657 = vmatmul.mubr.bf16.gmra.mrb[0].mxu0 %v390
  %v658 = vpop.f32.mrb[0].mxu0
  %v659 = vadd.f32 0.0, %v658
  %v660 = vpop.f32.mrb[0].mxu0
  %v661 = vpop.f32.mrb[0].mxu0
  %v662 = vadd.f32 0.0, %v661
  %v663 = vpop.f32.mrb[0].mxu0
  %664 = vmatprep.mubr.bf16.mxu0 %v393
  %665 = vmatmul.mubr.bf16.gmra.mrb[0].mxu0 %v392
  %v666 = vpop.f32.mrb[0].mxu0
  %v667 = vadd.f32 0.0, %v666
  %v668 = vpop.f32.mrb[0].mxu0
  %v669 = vpop.f32.mrb[0].mxu0
  %v670 = vadd.f32 0.0, %v669
  %v671 = vpop.f32.mrb[0].mxu0
  %672 = vmatprep.mubr.bf16.mxu0 %v395
  %673 = vmatmul.mubr.bf16.gmra.mrb[0].mxu0 %v394
  %v674 = vpop.f32.mrb[0].mxu0
  %v675 = vadd.f32 0.0, %v674
  %v676 = vpop.f32.mrb[0].mxu0
  %v677 = vpop.f32.mrb[0].mxu0
  %v678 = vadd.f32 0.0, %v677
  %v679 = vpop.f32.mrb[0].mxu0
  %680 = vmatprep.mubr.bf16.mxu0 %v397
  %681 = vmatmul.mubr.bf16.gmra.mrb[0].mxu0 %v396
  %v682 = vpop.f32.mrb[0].mxu0
  %v683 = vadd.f32 0.0, %v682
  %v684 = vpop.f32.mrb[0].mxu0
  %v685 = vpop.f32.mrb[0].mxu0
  %v686 = vadd.f32 0.0, %v685
  %v687 = vpop.f32.mrb[0].mxu0
  %688 = vmatprep.mubr.bf16.mxu0 %v399
  %689 = vmatmul.mubr.bf16.gmra.mrb[0].mxu0 %v398
  %v690 = vpop.f32.mrb[0].mxu0
  %v691 = vadd.f32 0.0, %v690
  %v692 = vpop.f32.mrb[0].mxu0
  %v693 = vpop.f32.mrb[0].mxu0
  %v694 = vadd.f32 0.0, %v693
  %v695 = vpop.f32.mrb[0].mxu0
  %696 = vmatprep.mubr.bf16.mxu0 %v401
  %697 = vmatmul.mubr.bf16.gmra.mrb[0].mxu0 %v400
  %v698 = vpop.f32.mrb[0].mxu0
  %v699 = vadd.f32 0.0, %v698
  %v700 = vpop.f32.mrb[0].mxu0
  %v701 = vpop.f32.mrb[0].mxu0
  %v702 = vadd.f32 0.0, %v701
  %v703 = vpop.f32.mrb[0].mxu0
  %704 = vmatprep.mubr.bf16.mxu0 %v403
  %705 = vmatmul.mubr.bf16.gmra.mrb[0].mxu0 %v402
  %v706 = vpop.f32.mrb[0].mxu0
  %v707 = vadd.f32 0.0, %v706
  %v708 = vpop.f32.mrb[0].mxu0
  %v709 = vpop.f32.mrb[0].mxu0
  %v710 = vadd.f32 0.0, %v709
  %v711 = vpop.f32.mrb[0].mxu0
  %712 = vmatprep.mubr.bf16.mxu0 %v405
  %713 = vmatmul.mubr.bf16.gmra.mrb[0].mxu0 %v404
  %v714 = vpop.f32.mrb[0].mxu0
  %v715 = vadd.f32 0.0, %v714
  %v716 = vpop.f32.mrb[0].mxu0
  %v717 = vpop.f32.mrb[0].mxu0
  %v718 = vadd.f32 0.0, %v717
  %v719 = vpop.f32.mrb[0].mxu0
  %720 = vmatprep.mubr.bf16.mxu0 %v407
  %721 = vmatmul.mubr.bf16.gmra.mrb[0].mxu0 %v406
  %v722 = vpop.f32.mrb[0].mxu0
  %v723 = vadd.f32 0.0, %v722
  %v724 = vpop.f32.mrb[0].mxu0
  %v725 = vpop.f32.mrb[0].mxu0
  %v726 = vadd.f32 0.0, %v725
  %v727 = vpop.f32.mrb[0].mxu0
  %728 = vmatprep.mubr.bf16.mxu0 %v409
  %729 = vmatmul.mubr.bf16.gmra.mrb[0].mxu0 %v408
  %v730 = vpop.f32.mrb[0].mxu0
  %v731 = vadd.f32 0.0, %v730
  %v732 = vpop.f32.mrb[0].mxu0
  %v733 = vpop.f32.mrb[0].mxu0
  %v734 = vadd.f32 0.0, %v733
  %v735 = vpop.f32.mrb[0].mxu0
  %736 = vmatprep.mubr.bf16.mxu0 %v411
  %737 = vmatmul.mubr.bf16.gmra.mrb[0].mxu0 %v410
  %v738 = vpop.f32.mrb[0].mxu0
  %v739 = vadd.f32 0.0, %v738
  %v740 = vpop.f32.mrb[0].mxu0
  %v741 = vpop.f32.mrb[0].mxu0
  %v742 = vadd.f32 0.0, %v741
  %v743 = vpop.f32.mrb[0].mxu0
  %744 = vmatprep.mubr.bf16.mxu0 %v413
  %745 = vmatmul.mubr.bf16.gmra.mrb[0].mxu0 %v412
  %v746 = vpop.f32.mrb[0].mxu0
  %v747 = vadd.f32 0.0, %v746
  %v748 = vpop.f32.mrb[0].mxu0
  %v749 = vpop.f32.mrb[0].mxu0
  %v750 = vadd.f32 0.0, %v749
  %v751 = vpop.f32.mrb[0].mxu0
  %752 = vmatprep.mubr.bf16.mxu0 %v415
  %753 = vmatmul.mubr.bf16.gmra.mrb[0].mxu0 %v414
  %v754 = vpop.f32.mrb[0].mxu0
  %v755 = vadd.f32 0.0, %v754
  %v756 = vpop.f32.mrb[0].mxu0
  %v757 = vpop.f32.mrb[0].mxu0
  %v758 = vadd.f32 0.0, %v757
  %v759 = vpop.f32.mrb[0].mxu0
  %760 = vmatprep.mubr.bf16.mxu0 %v417
  %761 = vmatmul.mubr.bf16.gmra.mrb[0].mxu0 %v416
  %v762 = vpop.f32.mrb[0].mxu0
  %v763 = vadd.f32 0.0, %v762
  %v764 = vpop.f32.mrb[0].mxu0
  %v765 = vpop.f32.mrb[0].mxu0
  %v766 = vadd.f32 0.0, %v765
  %v767 = vpop.f32.mrb[0].mxu0
  %768 = vmatprep.mubr.bf16.mxu0 %v419
  %769 = vmatmul.mubr.bf16.gmra.mrb[0].mxu0 %v418
  %v770 = vpop.f32.mrb[0].mxu0
  %v771 = vadd.f32 0.0, %v770
  %v772 = vpop.f32.mrb[0].mxu0
  %v773 = vpop.f32.mrb[0].mxu0
  %v774 = vadd.f32 0.0, %v773
  %v775 = vpop.f32.mrb[0].mxu0
  %776 = vmatprep.mubr.bf16.mxu0 %v421
  %777 = vmatmul.mubr.bf16.gmra.mrb[0].mxu0 %v420
  %v778 = vpop.f32.mrb[0].mxu0
  %v779 = vadd.f32 0.0, %v778
  %v780 = vpop.f32.mrb[0].mxu0
  %v781 = vpop.f32.mrb[0].mxu0
  %v782 = vadd.f32 0.0, %v781
  %v783 = vpop.f32.mrb[0].mxu0
  %784 = vmatprep.mubr.bf16.mxu0 %v423
  %785 = vmatmul.mubr.bf16.gmra.mrb[0].mxu0 %v422
  %v786 = vpop.f32.mrb[0].mxu0
  %v787 = vadd.f32 0.0, %v786
  %v788 = vpop.f32.mrb[0].mxu0
  %v789 = vpop.f32.mrb[0].mxu0
  %v790 = vadd.f32 0.0, %v789
  %v791 = vpop.f32.mrb[0].mxu0
  %792 = vmatprep.mubr.bf16.mxu0 %v425
  %793 = vmatmul.mubr.bf16.gmra.mrb[0].mxu0 %v424
  %v794 = vpop.f32.mrb[0].mxu0
  %v795 = vadd.f32 0.0, %v794
  %v796 = vpop.f32.mrb[0].mxu0
  %v797 = vpop.f32.mrb[0].mxu0
  %v798 = vadd.f32 0.0, %v797
  %v799 = vpop.f32.mrb[0].mxu0
  %800 = vmatprep.mubr.bf16.mxu0 %v427
  %801 = vmatmul.mubr.bf16.gmra.mrb[0].mxu0 %v426
  %v802 = vpop.f32.mrb[0].mxu0
  %v803 = vadd.f32 0.0, %v802
  %v804 = vpop.f32.mrb[0].mxu0
  %v805 = vpop.f32.mrb[0].mxu0
  %v806 = vadd.f32 0.0, %v805
  %v807 = vpop.f32.mrb[0].mxu0
  %808 = vmatprep.mubr.bf16.mxu0 %v429
  %809 = vmatmul.mubr.bf16.gmra.mrb[0].mxu0 %v428
  %v810 = vpop.f32.mrb[0].mxu0
  %v811 = vadd.f32 0.0, %v810
  %v812 = vpop.f32.mrb[0].mxu0
  %v813 = vpop.f32.mrb[0].mxu0
  %v814 = vadd.f32 0.0, %v813
  %v815 = vpop.f32.mrb[0].mxu0
  %816 = vmatprep.mubr.bf16.mxu0 %v431
  %817 = vmatmul.mubr.bf16.gmra.mrb[0].mxu0 %v430
  %v818 = vpop.f32.mrb[0].mxu0
  %v819 = vadd.f32 0.0, %v818
  %v820 = vpop.f32.mrb[0].mxu0
  %v821 = vpop.f32.mrb[0].mxu0
  %v822 = vadd.f32 0.0, %v821
  %v823 = vpop.f32.mrb[0].mxu0
  %824 = vdwg.mxu0
  %833 = vrot.lane.b32.xlu0 %v571, 8
  %v834 = vpop.permute.xlu0 %833
  %835 = vrot.lane.b32.xlu0 %v574, 8
  %v836 = vpop.permute.xlu0 %835
  %837 = vrot.lane.b32.xlu0 %v579, 8
  %v838 = vpop.permute.xlu0 %837
  %839 = vrot.lane.b32.xlu0 %v582, 8
  %v840 = vpop.permute.xlu0 %839
  %841 = vrot.lane.b32.xlu0 %v587, 8
  %v842 = vpop.permute.xlu0 %841
  %843 = vrot.lane.b32.xlu0 %v590, 8
  %v844 = vpop.permute.xlu0 %843
  %845 = vrot.lane.b32.xlu0 %v595, 8
  %v846 = vpop.permute.xlu0 %845
  %847 = vrot.lane.b32.xlu0 %v598, 8
  %v848 = vpop.permute.xlu0 %847
  %865 = vrot.lane.b32.xlu0 %v603, 16
  %v866 = vpop.permute.xlu0 %865
  %867 = vrot.lane.b32.xlu0 %v606, 16
  %v868 = vpop.permute.xlu0 %867
  %869 = vrot.lane.b32.xlu0 %v611, 16
  %v870 = vpop.permute.xlu0 %869
  %871 = vrot.lane.b32.xlu0 %v614, 16
  %v872 = vpop.permute.xlu0 %871
  %873 = vrot.lane.b32.xlu0 %v619, 16
  %v874 = vpop.permute.xlu0 %873
  %875 = vrot.lane.b32.xlu0 %v622, 16
  %v876 = vpop.permute.xlu0 %875
  %877 = vrot.lane.b32.xlu0 %v627, 16
  %v878 = vpop.permute.xlu0 %877
  %879 = vrot.lane.b32.xlu0 %v630, 16
  %v880 = vpop.permute.xlu0 %879
  %897 = vrot.lane.b32.xlu0 %v635, 24
  %v898 = vpop.permute.xlu0 %897
  %899 = vrot.lane.b32.xlu0 %v638, 24
  %v900 = vpop.permute.xlu0 %899
  %901 = vrot.lane.b32.xlu0 %v643, 24
  %v902 = vpop.permute.xlu0 %901
  %903 = vrot.lane.b32.xlu0 %v646, 24
  %v904 = vpop.permute.xlu0 %903
  %905 = vrot.lane.b32.xlu0 %v651, 24
  %v906 = vpop.permute.xlu0 %905
  %907 = vrot.lane.b32.xlu0 %v654, 24
  %v908 = vpop.permute.xlu0 %907
  %909 = vrot.lane.b32.xlu0 %v659, 24
  %v910 = vpop.permute.xlu0 %909
  %911 = vrot.lane.b32.xlu0 %v662, 24
  %v912 = vpop.permute.xlu0 %911
  %929 = vrot.lane.b32.xlu0 %v667, 32
  %v930 = vpop.permute.xlu0 %929
  %931 = vrot.lane.b32.xlu0 %v670, 32
  %v932 = vpop.permute.xlu0 %931
  %933 = vrot.lane.b32.xlu0 %v675, 32
  %v934 = vpop.permute.xlu0 %933
  %935 = vrot.lane.b32.xlu0 %v678, 32
  %v936 = vpop.permute.xlu0 %935
  %937 = vrot.lane.b32.xlu0 %v683, 32
  %v938 = vpop.permute.xlu0 %937
  %939 = vrot.lane.b32.xlu0 %v686, 32
  %v940 = vpop.permute.xlu0 %939
  %941 = vrot.lane.b32.xlu0 %v691, 32
  %v942 = vpop.permute.xlu0 %941
  %943 = vrot.lane.b32.xlu0 %v694, 32
  %v944 = vpop.permute.xlu0 %943
  %961 = vrot.lane.b32.xlu0 %v699, 40
  %v962 = vpop.permute.xlu0 %961
  %963 = vrot.lane.b32.xlu0 %v702, 40
  %v964 = vpop.permute.xlu0 %963
  %965 = vrot.lane.b32.xlu0 %v707, 40
  %v966 = vpop.permute.xlu0 %965
  %967 = vrot.lane.b32.xlu0 %v710, 40
  %v968 = vpop.permute.xlu0 %967
  %969 = vrot.lane.b32.xlu0 %v715, 40
  %v970 = vpop.permute.xlu0 %969
  %971 = vrot.lane.b32.xlu0 %v718, 40
  %v972 = vpop.permute.xlu0 %971
  %973 = vrot.lane.b32.xlu0 %v723, 40
  %v974 = vpop.permute.xlu0 %973
  %975 = vrot.lane.b32.xlu0 %v726, 40
  %v976 = vpop.permute.xlu0 %975
  %993 = vrot.lane.b32.xlu0 %v731, 48
  %v994 = vpop.permute.xlu0 %993
  %995 = vrot.lane.b32.xlu0 %v734, 48
  %v996 = vpop.permute.xlu0 %995
  %997 = vrot.lane.b32.xlu0 %v739, 48
  %v998 = vpop.permute.xlu0 %997
  %999 = vrot.lane.b32.xlu0 %v742, 48
  %v1000 = vpop.permute.xlu0 %999
  %1001 = vrot.lane.b32.xlu0 %v747, 48
  %v1002 = vpop.permute.xlu0 %1001
  %1003 = vrot.lane.b32.xlu0 %v750, 48
  %v1004 = vpop.permute.xlu0 %1003
  %1005 = vrot.lane.b32.xlu0 %v755, 48
  %v1006 = vpop.permute.xlu0 %1005
  %1007 = vrot.lane.b32.xlu0 %v758, 48
  %v1008 = vpop.permute.xlu0 %1007
  %1025 = vrot.lane.b32.xlu0 %v763, 56
  %v1026 = vpop.permute.xlu0 %1025
  %1027 = vrot.lane.b32.xlu0 %v766, 56
  %v1028 = vpop.permute.xlu0 %1027
  %1029 = vrot.lane.b32.xlu0 %v771, 56
  %v1030 = vpop.permute.xlu0 %1029
  %1031 = vrot.lane.b32.xlu0 %v774, 56
  %v1032 = vpop.permute.xlu0 %1031
  %1033 = vrot.lane.b32.xlu0 %v779, 56
  %v1034 = vpop.permute.xlu0 %1033
  %1035 = vrot.lane.b32.xlu0 %v782, 56
  %v1036 = vpop.permute.xlu0 %1035
  %1037 = vrot.lane.b32.xlu0 %v787, 56
  %v1038 = vpop.permute.xlu0 %1037
  %1039 = vrot.lane.b32.xlu0 %v790, 56
  %v1040 = vpop.permute.xlu0 %1039
  %1057 = vrot.lane.b32.xlu0 %v795, 64
  %v1058 = vpop.permute.xlu0 %1057
  %1059 = vrot.lane.b32.xlu0 %v798, 64
  %v1060 = vpop.permute.xlu0 %1059
  %1061 = vrot.lane.b32.xlu0 %v803, 64
  %v1062 = vpop.permute.xlu0 %1061
  %1063 = vrot.lane.b32.xlu0 %v806, 64
  %v1064 = vpop.permute.xlu0 %1063
  %1065 = vrot.lane.b32.xlu0 %v811, 64
  %v1066 = vpop.permute.xlu0 %1065
  %1067 = vrot.lane.b32.xlu0 %v814, 64
  %v1068 = vpop.permute.xlu0 %1067
  %1069 = vrot.lane.b32.xlu0 %v819, 64
  %v1070 = vpop.permute.xlu0 %1069
  %1071 = vrot.lane.b32.xlu0 %v822, 64
  %v1072 = vpop.permute.xlu0 %1071
  %vm1081 = vcmask 64512
  %v1082 = vsel %vm1081, %v539, %v834
  %v1083 = vsel %vm1081, %v542, %v836
  %v1084 = vsel %vm1081, %v547, %v838
  %v1085 = vsel %vm1081, %v550, %v840
  %v1086 = vsel %vm1081, %v555, %v842
  %v1087 = vsel %vm1081, %v558, %v844
  %v1088 = vsel %vm1081, %v563, %v846
  %v1089 = vsel %vm1081, %v566, %v848
  %vm1090 = vcmask 130048
  %v1091 = vsel %vm1090, %v1082, %v866
  %v1092 = vsel %vm1090, %v1083, %v868
  %v1093 = vsel %vm1090, %v1084, %v870
  %v1094 = vsel %vm1090, %v1085, %v872
  %v1095 = vsel %vm1090, %v1086, %v874
  %v1096 = vsel %vm1090, %v1087, %v876
  %v1097 = vsel %vm1090, %v1088, %v878
  %v1098 = vsel %vm1090, %v1089, %v880
  %vm1099 = vcmask 195584
  %v1100 = vsel %vm1099, %v1091, %v898
  %v1101 = vsel %vm1099, %v1092, %v900
  %v1102 = vsel %vm1099, %v1093, %v902
  %v1103 = vsel %vm1099, %v1094, %v904
  %v1104 = vsel %vm1099, %v1095, %v906
  %v1105 = vsel %vm1099, %v1096, %v908
  %v1106 = vsel %vm1099, %v1097, %v910
  %v1107 = vsel %vm1099, %v1098, %v912
  %vm1108 = vcmask 261120
  %v1109 = vsel %vm1108, %v1100, %v930
  %v1110 = vsel %vm1108, %v1101, %v932
  %v1111 = vsel %vm1108, %v1102, %v934
  %v1112 = vsel %vm1108, %v1103, %v936
  %v1113 = vsel %vm1108, %v1104, %v938
  %v1114 = vsel %vm1108, %v1105, %v940
  %v1115 = vsel %vm1108, %v1106, %v942
  %v1116 = vsel %vm1108, %v1107, %v944
  %vm1117 = vcmask 326656
  %v1118 = vsel %vm1117, %v1109, %v962
  %v1119 = vsel %vm1117, %v1110, %v964
  %v1120 = vsel %vm1117, %v1111, %v966
  %v1121 = vsel %vm1117, %v1112, %v968
  %v1122 = vsel %vm1117, %v1113, %v970
  %v1123 = vsel %vm1117, %v1114, %v972
  %v1124 = vsel %vm1117, %v1115, %v974
  %v1125 = vsel %vm1117, %v1116, %v976
  %vm1126 = vcmask 392192
  %v1127 = vsel %vm1126, %v1118, %v994
  %v1128 = vsel %vm1126, %v1119, %v996
  %v1129 = vsel %vm1126, %v1120, %v998
  %v1130 = vsel %vm1126, %v1121, %v1000
  %v1131 = vsel %vm1126, %v1122, %v1002
  %v1132 = vsel %vm1126, %v1123, %v1004
  %v1133 = vsel %vm1126, %v1124, %v1006
  %v1134 = vsel %vm1126, %v1125, %v1008
  %vm1135 = vcmask 457728
  %v1136 = vsel %vm1135, %v1127, %v1026
  %v1137 = vsel %vm1135, %v1128, %v1028
  %v1138 = vsel %vm1135, %v1129, %v1030
  %v1139 = vsel %vm1135, %v1130, %v1032
  %v1140 = vsel %vm1135, %v1131, %v1034
  %v1141 = vsel %vm1135, %v1132, %v1036
  %v1142 = vsel %vm1135, %v1133, %v1038
  %v1143 = vsel %vm1135, %v1134, %v1040
  %vm1144 = vcmask 523264
  %v1145 = vsel %vm1144, %v1136, %v1058
  %v1146 = vsel %vm1144, %v1137, %v1060
  %v1147 = vsel %vm1144, %v1138, %v1062
  %v1148 = vsel %vm1144, %v1139, %v1064
  %v1149 = vsel %vm1144, %v1140, %v1066
  %v1150 = vsel %vm1144, %v1141, %v1068
  %v1151 = vsel %vm1144, %v1142, %v1070
  %v1152 = vsel %vm1144, %v1143, %v1072
  %v1153 = vpack.c.bf16 %v1146, %v1145
  %v1154 = vpack.c.bf16 %v1148, %v1147
  %v1155 = vpack.c.bf16 %v1150, %v1149
  %v1156 = vpack.c.bf16 %v1152, %v1151
  %v1157 = vld [vmem:[%s2] sm:$0xf]
  %v1158 = vld [vmem:[%s2 + $0x4] sm:$0xf]
  %v1159 = vld [vmem:[%s2 + $0x8] sm:$0xf]
  %v1160 = vld [vmem:[%s2 + $0xc] sm:$0xf]
  %v1161 = vld [vmem:[%s2 + $0x10] sm:$0xf]
  %v1162 = vld [vmem:[%s2 + $0x14] sm:$0xf]
  %v1163 = vld [vmem:[%s2 + $0x18] sm:$0xf]
  %v1164 = vld [vmem:[%s2 + $0x1c] sm:$0xf]
  %v1165 = vld [vmem:[%s2 + $0x20] sm:$0xf]
  %v1175 = vunpack.c.l.b16 %v1157
  %v1176 = vunpack.c.l.b16 %v1158
  %v1177 = vunpack.c.l.b16 %v1159
  %v1178 = vunpack.c.l.b16 %v1160
  %v1179 = vunpack.c.l.b16 %v1161
  %v1180 = vunpack.c.l.b16 %v1162
  %v1181 = vunpack.c.l.b16 %v1163
  %v1182 = vunpack.c.l.b16 %v1164
  %v1183 = vunpack.c.l.b16 %v1165
  %v1184 = vpack.c.b16 %v1176, %v1175
  %v1185 = vpack.c.b16 %v1178, %v1177
  %v1186 = vpack.c.b16 %v1180, %v1179
  %v1187 = vpack.c.b16 %v1182, %v1181
  %v1188 = vpack.c.b16 %v1183, %v1183
  %vm1193 = vcmask 588800
  %v1195 = vsel %vm1193, %v1153, 0
  %v1198 = vsel %vm1193, %v1154, 0
  %v1201 = vsel %vm1193, %v1155, 0
  %v1204 = vsel %vm1193, %v1156, 0
  %vm1206 = vcmask 1043456
  %v1208 = vsel %vm1206, %v1188, 0
  %1210 = vmatprep.subr.bf16.mxu0 0
  %1211 = vmatpush1.bf16.msra.mxu0 %v1184
  %1212 = vmatprep.subr.bf16.mxu0 0
  %1213 = vmatpush1.bf16.msra.mxu0 %v1185
  %1214 = vmatprep.subr.bf16.mxu0 0
  %1215 = vmatpush1.bf16.msra.mxu0 %v1186
  %1216 = vmatprep.subr.bf16.mxu0 0
  %1217 = vmatpush1.bf16.msra.mxu0 %v1187
  %1218 = vmatprep.subr.bf16.mxu0 0
  %1219 = vmatpush1.bf16.msra.mxu0 %v1208
  %1220 = vmatprep.subr.bf16.mxu0 0
  %1221 = vmatpush1.bf16.msra.mxu0 0
  %1222 = vmatprep.subr.bf16.mxu0 0
  %1223 = vmatpush1.bf16.msra.mxu0 0
  %1224 = vmatprep.subr.bf16.mxu0 0
  %1225 = vmatpush1.bf16.msra.mxu0 0
  %1226 = vmatprep.subr.bf16.mxu0 0
  %1227 = vmatpush1.bf16.msra.mxu0 0
  %1228 = vmatprep.subr.bf16.mxu0 0
  %1229 = vmatpush1.bf16.msra.mxu0 0
  %1230 = vmatprep.subr.bf16.mxu0 0
  %1231 = vmatpush1.bf16.msra.mxu0 0
  %1232 = vmatprep.subr.bf16.mxu0 0
  %1233 = vmatpush1.bf16.msra.mxu0 0
  %1234 = vmatprep.subr.bf16.mxu0 0
  %1235 = vmatpush1.bf16.msra.mxu0 0
  %1236 = vmatprep.subr.bf16.mxu0 0
  %1237 = vmatpush1.bf16.msra.mxu0 0
  %1238 = vmatprep.subr.bf16.mxu0 0
  %1239 = vmatpush1.bf16.msra.mxu0 0
  %1240 = vmatprep.subr.bf16.mxu0 0
  %1241 = vmatpush1.bf16.msra.mxu0 0
  %1242 = vmatprep.mubr.bf16.mxu0 0
  %1243 = vmatmul.mubr.bf16.gmra.mrb[0].mxu0 %v1195
  %v1244 = vpop.f32.mrb[0].mxu0
  %v1245 = vadd.f32 0.0, %v1244
  %v1246 = vpop.f32.mrb[0].mxu0
  %v1247 = vpop.f32.mrb[0].mxu0
  %v1248 = vadd.f32 0.0, %v1247
  %v1249 = vpop.f32.mrb[0].mxu0
  %1250 = vmatprep.mubr.bf16.mxu0 0
  %1251 = vmatmul.mubr.bf16.gmra.mrb[0].mxu0 %v1198
  %v1252 = vpop.f32.mrb[0].mxu0
  %v1253 = vadd.f32 0.0, %v1252
  %v1254 = vpop.f32.mrb[0].mxu0
  %v1255 = vpop.f32.mrb[0].mxu0
  %v1256 = vadd.f32 0.0, %v1255
  %v1257 = vpop.f32.mrb[0].mxu0
  %1258 = vmatprep.mubr.bf16.mxu0 0
  %1259 = vmatmul.mubr.bf16.gmra.mrb[0].mxu0 %v1201
  %v1260 = vpop.f32.mrb[0].mxu0
  %v1261 = vadd.f32 0.0, %v1260
  %v1262 = vpop.f32.mrb[0].mxu0
  %v1263 = vpop.f32.mrb[0].mxu0
  %v1264 = vadd.f32 0.0, %v1263
  %v1265 = vpop.f32.mrb[0].mxu0
  %1266 = vmatprep.mubr.bf16.mxu0 0
  %1267 = vmatmul.mubr.bf16.gmra.mrb[0].mxu0 %v1204
  %v1268 = vpop.f32.mrb[0].mxu0
  %v1269 = vadd.f32 0.0, %v1268
  %v1270 = vpop.f32.mrb[0].mxu0
  %v1271 = vpop.f32.mrb[0].mxu0
  %v1272 = vadd.f32 0.0, %v1271
  %v1273 = vpop.f32.mrb[0].mxu0
  %1274 = vdwg.mxu0
  %v1275 = vsel %vm1108, %v1245, 0.0
  %v1276 = vsel %vm1108, %v1248, 0.0
  %v1277 = vadd.f32 %v1275, %v1276
  %v1278 = vsel %vm1108, %v1253, 0.0
  %v1279 = vadd.f32 %v1277, %v1278
  %v1280 = vsel %vm1108, %v1256, 0.0
  %v1281 = vadd.f32 %v1279, %v1280
  %v1282 = vsel %vm1108, %v1261, 0.0
  %v1283 = vadd.f32 %v1281, %v1282
  %v1284 = vsel %vm1108, %v1264, 0.0
  %v1285 = vadd.f32 %v1283, %v1284
  %v1286 = vsel %vm1108, %v1269, 0.0
  %v1287 = vadd.f32 %v1285, %v1286
  %v1288 = vsel %vm1108, %v1272, 0.0
  %v1289 = vadd.f32 %v1287, %v1288
  %v1290 = vrot.slane %v1289, 4
  %v1291 = vadd.f32 %v1289, %v1290
  %v1292 = vrot.slane %v1291, 2
  %v1293 = vadd.f32 %v1291, %v1292
  %v1294 = vrot.slane %v1293, 1
  %v1295 = vadd.f32 %v1293, %v1294
  %v1296 = vrcp.pop 64.0
  %v1297 = vmul.f32 %v1295, %v1296
  %v1298 = vsub.f32 %v1245, %v1297
  %v1299 = vsub.f32 %v1248, %v1297
  %v1300 = vsub.f32 %v1253, %v1297
  %v1301 = vsub.f32 %v1256, %v1297
  %v1302 = vsub.f32 %v1261, %v1297
  %v1303 = vsub.f32 %v1264, %v1297
  %v1304 = vsub.f32 %v1269, %v1297
  %v1305 = vsub.f32 %v1272, %v1297
  %v1306 = vmul.f32 %v1298, %v1298
  %v1307 = vmul.f32 %v1299, %v1299
  %v1308 = vmul.f32 %v1300, %v1300
  %v1309 = vmul.f32 %v1301, %v1301
  %v1310 = vmul.f32 %v1302, %v1302
  %v1311 = vmul.f32 %v1303, %v1303
  %v1312 = vmul.f32 %v1304, %v1304
  %v1313 = vmul.f32 %v1305, %v1305
  %v1314 = vsel %vm1108, %v1306, 0.0
  %v1315 = vsel %vm1108, %v1307, 0.0
  %v1316 = vadd.f32 %v1314, %v1315
  %v1317 = vsel %vm1108, %v1308, 0.0
  %v1318 = vadd.f32 %v1316, %v1317
  %v1319 = vsel %vm1108, %v1309, 0.0
  %v1320 = vadd.f32 %v1318, %v1319
  %v1321 = vsel %vm1108, %v1310, 0.0
  %v1322 = vadd.f32 %v1320, %v1321
  %v1323 = vsel %vm1108, %v1311, 0.0
  %v1324 = vadd.f32 %v1322, %v1323
  %v1325 = vsel %vm1108, %v1312, 0.0
  %v1326 = vadd.f32 %v1324, %v1325
  %v1327 = vsel %vm1108, %v1313, 0.0
  %v1328 = vadd.f32 %v1326, %v1327
  %v1329 = vrot.slane %v1328, 4
  %v1330 = vadd.f32 %v1328, %v1329
  %v1331 = vrot.slane %v1330, 2
  %v1332 = vadd.f32 %v1330, %v1331
  %v1333 = vrot.slane %v1332, 1
  %v1334 = vadd.f32 %v1332, %v1333
  %v1335 = vmul.f32 %v1334, %v1296
  %v1336 = vadd.f32 %v1335, 1e-05
  %v1337 = vrsqrt.pop %v1336
  %v1338 = vmul.f32 %v1298, %v1337
  %v1339 = vmul.f32 %v1299, %v1337
  %v1340 = vmul.f32 %v1300, %v1337
  %v1341 = vmul.f32 %v1301, %v1337
  %v1342 = vmul.f32 %v1302, %v1337
  %v1343 = vmul.f32 %v1303, %v1337
  %v1344 = vmul.f32 %v1304, %v1337
  %v1345 = vmul.f32 %v1305, %v1337
  %vm1346 = vcmp.ge.f32.partialorder %v1338, 0.0
  %vm1347 = vcmp.ge.f32.partialorder %v1339, 0.0
  %vm1348 = vcmp.ge.f32.partialorder %v1340, 0.0
  %vm1349 = vcmp.ge.f32.partialorder %v1341, 0.0
  %vm1350 = vcmp.ge.f32.partialorder %v1342, 0.0
  %vm1351 = vcmp.ge.f32.partialorder %v1343, 0.0
  %vm1352 = vcmp.ge.f32.partialorder %v1344, 0.0
  %vm1353 = vcmp.ge.f32.partialorder %v1345, 0.0
  %v1354 = vmul.f32 %v1338, 0.01
  %v1355 = vmul.f32 %v1339, 0.01
  %v1356 = vmul.f32 %v1340, 0.01
  %v1357 = vmul.f32 %v1341, 0.01
  %v1358 = vmul.f32 %v1342, 0.01
  %v1359 = vmul.f32 %v1343, 0.01
  %v1360 = vmul.f32 %v1344, 0.01
  %v1361 = vmul.f32 %v1345, 0.01
  %v1362 = vsel %vm1346, %v1338, %v1354
  %v1363 = vsel %vm1347, %v1339, %v1355
  %v1364 = vsel %vm1348, %v1340, %v1356
  %v1365 = vsel %vm1349, %v1341, %v1357
  %v1366 = vsel %vm1350, %v1342, %v1358
  %v1367 = vsel %vm1351, %v1343, %v1359
  %v1368 = vsel %vm1352, %v1344, %v1360
  %v1369 = vsel %vm1353, %v1345, %v1361
  %v1370 = vld [vmem:[%s3] sm:$0xf]
  %v1371 = vld [vmem:[%s3 + $0x4] sm:$0xf]
  %v1372 = vld [vmem:[%s3 + $0x8] sm:$0xf]
  %v1373 = vld [vmem:[%s3 + $0xc] sm:$0xf]
  %v1374 = vld [vmem:[%s3 + $0x10] sm:$0xf]
  %v1375 = vld [vmem:[%s3 + $0x14] sm:$0xf]
  %v1376 = vld [vmem:[%s3 + $0x18] sm:$0xf]
  %v1377 = vld [vmem:[%s3 + $0x1c] sm:$0xf]
  %v1378 = vld [vmem:[%s3 + $0x20] sm:$0xf]
  %v1379 = vld [vmem:[%s3 + $0x24] sm:$0xf]
  %v1380 = vld [vmem:[%s3 + $0x28] sm:$0xf]
  %v1381 = vld [vmem:[%s3 + $0x2c] sm:$0xf]
  %v1382 = vld [vmem:[%s3 + $0x30] sm:$0xf]
  %v1383 = vld [vmem:[%s3 + $0x34] sm:$0xf]
  %v1384 = vld [vmem:[%s3 + $0x38] sm:$0xf]
  %v1385 = vld [vmem:[%s3 + $0x3c] sm:$0xf]
  %v1386 = vld [vmem:[%s3 + $0x40] sm:$0xf]
  %v1387 = vld [vmem:[%s3 + $0x44] sm:$0xf]
  %v1388 = vpack.c.bf16 %v1363, %v1362
  %v1389 = vpack.c.bf16 %v1365, %v1364
  %v1390 = vpack.c.bf16 %v1367, %v1366
  %v1391 = vpack.c.bf16 %v1369, %v1368
  %v1410 = vunpack.c.l.b16 %v1370
  %v1411 = vunpack.c.l.b16 %v1371
  %v1412 = vunpack.c.l.b16 %v1372
  %v1413 = vunpack.c.l.b16 %v1373
  %v1414 = vunpack.c.l.b16 %v1374
  %v1415 = vunpack.c.l.b16 %v1375
  %v1416 = vunpack.c.l.b16 %v1376
  %v1417 = vunpack.c.l.b16 %v1377
  %v1418 = vunpack.c.l.b16 %v1378
  %v1419 = vunpack.c.l.b16 %v1379
  %v1420 = vunpack.c.l.b16 %v1380
  %v1421 = vunpack.c.l.b16 %v1381
  %v1422 = vunpack.c.l.b16 %v1382
  %v1423 = vunpack.c.l.b16 %v1383
  %v1424 = vunpack.c.l.b16 %v1384
  %v1425 = vunpack.c.l.b16 %v1385
  %v1426 = vunpack.c.l.b16 %v1386
  %v1427 = vunpack.c.l.b16 %v1387
  %v1428 = vpack.c.b16 %v1411, %v1410
  %v1429 = vpack.c.b16 %v1413, %v1412
  %v1430 = vpack.c.b16 %v1415, %v1414
  %v1431 = vpack.c.b16 %v1417, %v1416
  %v1432 = vpack.c.b16 %v1419, %v1418
  %v1433 = vpack.c.b16 %v1421, %v1420
  %v1434 = vpack.c.b16 %v1423, %v1422
  %v1435 = vpack.c.b16 %v1425, %v1424
  %v1436 = vpack.c.b16 %v1427, %v1426
  %v1438 = vsel %vm1144, %v1428, 0
  %v1441 = vsel %vm1144, %v1429, 0
  %v1444 = vsel %vm1144, %v1430, 0
  %v1447 = vsel %vm1144, %v1431, 0
  %v1450 = vsel %vm1144, %v1432, 0
  %v1453 = vsel %vm1144, %v1433, 0
  %v1456 = vsel %vm1144, %v1434, 0
  %v1459 = vsel %vm1144, %v1435, 0
  %v1462 = vsel %vm1144, %v1436, 0
  %1464 = vmatprep.subr.bf16.mxu0 0
  %1465 = vmatpush1.bf16.msra.mxu0 %v1388
  %1466 = vmatprep.subr.bf16.mxu0 0
  %1467 = vmatpush1.bf16.msra.mxu0 %v1389
  %1468 = vmatprep.subr.bf16.mxu0 0
  %1469 = vmatpush1.bf16.msra.mxu0 %v1390
  %1470 = vmatprep.subr.bf16.mxu0 0
  %1471 = vmatpush1.bf16.msra.mxu0 %v1391
  %1472 = vmatprep.subr.bf16.mxu0 0
  %1473 = vmatpush1.bf16.msra.mxu0 0
  %1474 = vmatprep.subr.bf16.mxu0 0
  %1475 = vmatpush1.bf16.msra.mxu0 0
  %1476 = vmatprep.subr.bf16.mxu0 0
  %1477 = vmatpush1.bf16.msra.mxu0 0
  %1478 = vmatprep.subr.bf16.mxu0 0
  %1479 = vmatpush1.bf16.msra.mxu0 0
  %1480 = vmatprep.subr.bf16.mxu0 0
  %1481 = vmatpush1.bf16.msra.mxu0 0
  %1482 = vmatprep.subr.bf16.mxu0 0
  %1483 = vmatpush1.bf16.msra.mxu0 0
  %1484 = vmatprep.subr.bf16.mxu0 0
  %1485 = vmatpush1.bf16.msra.mxu0 0
  %1486 = vmatprep.subr.bf16.mxu0 0
  %1487 = vmatpush1.bf16.msra.mxu0 0
  %1488 = vmatprep.subr.bf16.mxu0 0
  %1489 = vmatpush1.bf16.msra.mxu0 0
  %1490 = vmatprep.subr.bf16.mxu0 0
  %1491 = vmatpush1.bf16.msra.mxu0 0
  %1492 = vmatprep.subr.bf16.mxu0 0
  %1493 = vmatpush1.bf16.msra.mxu0 0
  %1494 = vmatprep.subr.bf16.mxu0 0
  %1495 = vmatpush1.bf16.msra.mxu0 0
  %1496 = vmatprep.mubr.bf16.mxu0 0
  %1497 = vmatmul.mubr.bf16.gmra.mrb[0].mxu0 %v1438
  %v1498 = vpop.f32.mrb[0].mxu0
  %v1499 = vadd.f32 0.0, %v1498
  %v1500 = vpop.f32.mrb[0].mxu0
  %v1501 = vpop.f32.mrb[0].mxu0
  %v1502 = vadd.f32 0.0, %v1501
  %v1503 = vpop.f32.mrb[0].mxu0
  %1504 = vmatprep.mubr.bf16.mxu0 0
  %1505 = vmatmul.mubr.bf16.gmra.mrb[0].mxu0 %v1441
  %v1506 = vpop.f32.mrb[0].mxu0
  %v1507 = vadd.f32 0.0, %v1506
  %v1508 = vpop.f32.mrb[0].mxu0
  %v1509 = vpop.f32.mrb[0].mxu0
  %v1510 = vadd.f32 0.0, %v1509
  %v1511 = vpop.f32.mrb[0].mxu0
  %1512 = vmatprep.mubr.bf16.mxu0 0
  %1513 = vmatmul.mubr.bf16.gmra.mrb[0].mxu0 %v1444
  %v1514 = vpop.f32.mrb[0].mxu0
  %v1515 = vadd.f32 0.0, %v1514
  %v1516 = vpop.f32.mrb[0].mxu0
  %v1517 = vpop.f32.mrb[0].mxu0
  %v1518 = vadd.f32 0.0, %v1517
  %v1519 = vpop.f32.mrb[0].mxu0
  %1520 = vmatprep.mubr.bf16.mxu0 0
  %1521 = vmatmul.mubr.bf16.gmra.mrb[0].mxu0 %v1447
  %v1522 = vpop.f32.mrb[0].mxu0
  %v1523 = vadd.f32 0.0, %v1522
  %v1524 = vpop.f32.mrb[0].mxu0
  %v1525 = vpop.f32.mrb[0].mxu0
  %v1526 = vadd.f32 0.0, %v1525
  %v1527 = vpop.f32.mrb[0].mxu0
  %1528 = vmatprep.mubr.bf16.mxu0 0
  %1529 = vmatmul.mubr.bf16.gmra.mrb[0].mxu0 %v1450
  %v1530 = vpop.f32.mrb[0].mxu0
  %v1531 = vadd.f32 0.0, %v1530
  %v1532 = vpop.f32.mrb[0].mxu0
  %v1533 = vpop.f32.mrb[0].mxu0
  %v1534 = vadd.f32 0.0, %v1533
  %v1535 = vpop.f32.mrb[0].mxu0
  %1536 = vmatprep.mubr.bf16.mxu0 0
  %1537 = vmatmul.mubr.bf16.gmra.mrb[0].mxu0 %v1453
  %v1538 = vpop.f32.mrb[0].mxu0
  %v1539 = vadd.f32 0.0, %v1538
  %v1540 = vpop.f32.mrb[0].mxu0
  %v1541 = vpop.f32.mrb[0].mxu0
  %v1542 = vadd.f32 0.0, %v1541
  %v1543 = vpop.f32.mrb[0].mxu0
  %1544 = vmatprep.mubr.bf16.mxu0 0
  %1545 = vmatmul.mubr.bf16.gmra.mrb[0].mxu0 %v1456
  %v1546 = vpop.f32.mrb[0].mxu0
  %v1547 = vadd.f32 0.0, %v1546
  %v1548 = vpop.f32.mrb[0].mxu0
  %v1549 = vpop.f32.mrb[0].mxu0
  %v1550 = vadd.f32 0.0, %v1549
  %v1551 = vpop.f32.mrb[0].mxu0
  %1552 = vmatprep.mubr.bf16.mxu0 0
  %1553 = vmatmul.mubr.bf16.gmra.mrb[0].mxu0 %v1459
  %v1554 = vpop.f32.mrb[0].mxu0
  %v1555 = vadd.f32 0.0, %v1554
  %v1556 = vpop.f32.mrb[0].mxu0
  %v1557 = vpop.f32.mrb[0].mxu0
  %v1558 = vadd.f32 0.0, %v1557
  %v1559 = vpop.f32.mrb[0].mxu0
  %1560 = vmatprep.mubr.bf16.mxu0 0
  %1561 = vmatmul.mubr.bf16.gmra.mrb[0].mxu0 %v1462
  %v1562 = vpop.f32.mrb[0].mxu0
  %v1563 = vadd.f32 0.0, %v1562
  %v1564 = vpop.f32.mrb[0].mxu0
  %v1565 = vpop.f32.mrb[0].mxu0
  %v1566 = vadd.f32 0.0, %v1565
  %v1567 = vpop.f32.mrb[0].mxu0
  %1568 = vdwg.mxu0
  %1571 = vrot.lane.b32.xlu0 %v1507, 32
  %v1572 = vpop.permute.xlu0 %1571
  %1573 = vrot.lane.b32.xlu0 %v1510, 32
  %v1574 = vpop.permute.xlu0 %1573
  %1579 = vrot.lane.b32.xlu0 %v1515, 64
  %v1580 = vpop.permute.xlu0 %1579
  %1581 = vrot.lane.b32.xlu0 %v1518, 64
  %v1582 = vpop.permute.xlu0 %1581
  %1587 = vrot.lane.b32.xlu0 %v1523, 96
  %v1588 = vpop.permute.xlu0 %1587
  %1589 = vrot.lane.b32.xlu0 %v1526, 96
  %v1590 = vpop.permute.xlu0 %1589
  %1595 = vrot.lane.b32.xlu0 %v1539, 32
  %v1596 = vpop.permute.xlu0 %1595
  %1597 = vrot.lane.b32.xlu0 %v1542, 32
  %v1598 = vpop.permute.xlu0 %1597
  %1603 = vrot.lane.b32.xlu0 %v1547, 64
  %v1604 = vpop.permute.xlu0 %1603
  %1605 = vrot.lane.b32.xlu0 %v1550, 64
  %v1606 = vpop.permute.xlu0 %1605
  %1611 = vrot.lane.b32.xlu0 %v1555, 96
  %v1612 = vpop.permute.xlu0 %1611
  %1613 = vrot.lane.b32.xlu0 %v1558, 96
  %v1614 = vpop.permute.xlu0 %1613
  %v1617 = vsel %vm1108, %v1499, %v1572
  %v1618 = vsel %vm1108, %v1502, %v1574
  %v1619 = vsel %vm1144, %v1617, %v1580
  %v1620 = vsel %vm1144, %v1618, %v1582
  %vm1621 = vcmask 785408
  %v1622 = vsel %vm1621, %v1619, %v1588
  %v1623 = vsel %vm1621, %v1620, %v1590
  %v1624 = vsel %vm1108, %v1531, %v1596
  %v1625 = vsel %vm1108, %v1534, %v1598
  %v1626 = vsel %vm1144, %v1624, %v1604
  %v1627 = vsel %vm1144, %v1625, %v1606
  %v1628 = vsel %vm1621, %v1626, %v1612
  %v1629 = vsel %vm1621, %v1627, %v1614
  %v1630 = vpack.c.bf16 %v1623, %v1622
  %v1631 = vpack.c.bf16 %v1629, %v1628
  %v1632 = vpack.c.bf16 %v1566, %v1563
  %v1633 = vld [vmem:[%s4] sm:$0xf]
  %v1634 = vld [vmem:[%s4 + $0x4] sm:$0xf]
  %v1635 = vld [vmem:[%s4 + $0x8] sm:$0xf]
  %v1636 = vld [vmem:[%s4 + $0xc] sm:$0xf]
  %v1637 = vld [vmem:[%s4 + $0x10] sm:$0xf]
  %v1638 = vld [vmem:[%s4 + $0x14] sm:$0xf]
  %v1639 = vld [vmem:[%s4 + $0x18] sm:$0xf]
  %v1640 = vld [vmem:[%s4 + $0x1c] sm:$0xf]
  %v1641 = vld [vmem:[%s4 + $0x20] sm:$0xf]
  %v1642 = vld [vmem:[%s4 + $0x24] sm:$0xf]
  %v1643 = vld [vmem:[%s4 + $0x28] sm:$0xf]
  %v1644 = vld [vmem:[%s4 + $0x2c] sm:$0xf]
  %v1645 = vld [vmem:[%s4 + $0x30] sm:$0xf]
  %v1646 = vld [vmem:[%s4 + $0x34] sm:$0xf]
  %v1647 = vld [vmem:[%s4 + $0x38] sm:$0xf]
  %v1648 = vld [vmem:[%s4 + $0x3c] sm:$0xf]
  %v1649 = vld [vmem:[%s4 + $0x40] sm:$0xf]
  %v1650 = vld [vmem:[%s4 + $0x44] sm:$0xf]
  %v1651 = vld [vmem:[%s4 + $0x48] sm:$0xf]
  %v1652 = vld [vmem:[%s4 + $0x4c] sm:$0xf]
  %v1653 = vld [vmem:[%s4 + $0x50] sm:$0xf]
  %v1654 = vld [vmem:[%s4 + $0x54] sm:$0xf]
  %v1655 = vld [vmem:[%s4 + $0x58] sm:$0xf]
  %v1656 = vld [vmem:[%s4 + $0x5c] sm:$0xf]
  %v1657 = vld [vmem:[%s4 + $0x60] sm:$0xf]
  %v1658 = vld [vmem:[%s4 + $0x64] sm:$0xf]
  %v1659 = vld [vmem:[%s4 + $0x68] sm:$0xf]
  %v1660 = vld [vmem:[%s4 + $0x6c] sm:$0xf]
  %v1661 = vld [vmem:[%s4 + $0x70] sm:$0xf]
  %v1662 = vld [vmem:[%s4 + $0x74] sm:$0xf]
  %v1663 = vld [vmem:[%s4 + $0x78] sm:$0xf]
  %v1664 = vld [vmem:[%s4 + $0x7c] sm:$0xf]
  %v1665 = vld [vmem:[%s4 + $0x80] sm:$0xf]
  %v1666 = vld [vmem:[%s4 + $0x84] sm:$0xf]
  %v1667 = vld [vmem:[%s4 + $0x88] sm:$0xf]
  %v1668 = vld [vmem:[%s4 + $0x8c] sm:$0xf]
  %v1705 = vunpack.c.l.b16 %v1633
  %v1706 = vunpack.c.l.b16 %v1634
  %v1707 = vunpack.c.l.b16 %v1635
  %v1708 = vunpack.c.l.b16 %v1636
  %v1709 = vunpack.c.l.b16 %v1637
  %v1710 = vunpack.c.l.b16 %v1638
  %v1711 = vunpack.c.l.b16 %v1639
  %v1712 = vunpack.c.l.b16 %v1640
  %v1713 = vunpack.c.l.b16 %v1641
  %v1714 = vunpack.c.l.b16 %v1642
  %v1715 = vunpack.c.l.b16 %v1643
  %v1716 = vunpack.c.l.b16 %v1644
  %v1717 = vunpack.c.l.b16 %v1645
  %v1718 = vunpack.c.l.b16 %v1646
  %v1719 = vunpack.c.l.b16 %v1647
  %v1720 = vunpack.c.l.b16 %v1648
  %v1721 = vunpack.c.l.b16 %v1649
  %v1722 = vunpack.c.l.b16 %v1650
  %v1723 = vunpack.c.l.b16 %v1651
  %v1724 = vunpack.c.l.b16 %v1652
  %v1725 = vunpack.c.l.b16 %v1653
  %v1726 = vunpack.c.l.b16 %v1654
  %v1727 = vunpack.c.l.b16 %v1655
  %v1728 = vunpack.c.l.b16 %v1656
  %v1729 = vunpack.c.l.b16 %v1657
  %v1730 = vunpack.c.l.b16 %v1658
  %v1731 = vunpack.c.l.b16 %v1659
  %v1732 = vunpack.c.l.b16 %v1660
  %v1733 = vunpack.c.l.b16 %v1661
  %v1734 = vunpack.c.l.b16 %v1662
  %v1735 = vunpack.c.l.b16 %v1663
  %v1736 = vunpack.c.l.b16 %v1664
  %v1737 = vunpack.c.l.b16 %v1665
  %v1738 = vunpack.c.l.b16 %v1666
  %v1739 = vunpack.c.l.b16 %v1667
  %v1740 = vunpack.c.l.b16 %v1668
  %v1741 = vpack.c.b16 %v1706, %v1705
  %v1742 = vpack.c.b16 %v1708, %v1707
  %v1743 = vpack.c.b16 %v1710, %v1709
  %v1744 = vpack.c.b16 %v1712, %v1711
  %v1745 = vpack.c.b16 %v1714, %v1713
  %v1746 = vpack.c.b16 %v1716, %v1715
  %v1747 = vpack.c.b16 %v1718, %v1717
  %v1748 = vpack.c.b16 %v1720, %v1719
  %v1749 = vpack.c.b16 %v1722, %v1721
  %v1750 = vpack.c.b16 %v1724, %v1723
  %v1751 = vpack.c.b16 %v1726, %v1725
  %v1752 = vpack.c.b16 %v1728, %v1727
  %v1753 = vpack.c.b16 %v1730, %v1729
  %v1754 = vpack.c.b16 %v1732, %v1731
  %v1755 = vpack.c.b16 %v1734, %v1733
  %v1756 = vpack.c.b16 %v1736, %v1735
  %v1757 = vpack.c.b16 %v1738, %v1737
  %v1758 = vpack.c.b16 %v1740, %v1739
  %v1778 = vsel %vm1108, %v1632, 0
  %1780 = vmatprep.subr.bf16.mxu0 0
  %1781 = vmatpush1.bf16.msra.mxu0 %v1741
  %1782 = vmatprep.subr.bf16.mxu0 0
  %1783 = vmatpush1.bf16.msra.mxu0 %v1742
  %1784 = vmatprep.subr.bf16.mxu0 0
  %1785 = vmatpush1.bf16.msra.mxu0 %v1743
  %1786 = vmatprep.subr.bf16.mxu0 0
  %1787 = vmatpush1.bf16.msra.mxu0 %v1744
  %1788 = vmatprep.subr.bf16.mxu0 0
  %1789 = vmatpush1.bf16.msra.mxu0 %v1745
  %1790 = vmatprep.subr.bf16.mxu0 0
  %1791 = vmatpush1.bf16.msra.mxu0 %v1746
  %1792 = vmatprep.subr.bf16.mxu0 0
  %1793 = vmatpush1.bf16.msra.mxu0 %v1747
  %1794 = vmatprep.subr.bf16.mxu0 0
  %1795 = vmatpush1.bf16.msra.mxu0 %v1748
  %1796 = vmatprep.subr.bf16.mxu0 0
  %1797 = vmatpush1.bf16.msra.mxu0 %v1749
  %1798 = vmatprep.subr.bf16.mxu0 0
  %1799 = vmatpush1.bf16.msra.mxu0 %v1750
  %1800 = vmatprep.subr.bf16.mxu0 0
  %1801 = vmatpush1.bf16.msra.mxu0 %v1751
  %1802 = vmatprep.subr.bf16.mxu0 0
  %1803 = vmatpush1.bf16.msra.mxu0 %v1752
  %1804 = vmatprep.subr.bf16.mxu0 0
  %1805 = vmatpush1.bf16.msra.mxu0 %v1753
  %1806 = vmatprep.subr.bf16.mxu0 0
  %1807 = vmatpush1.bf16.msra.mxu0 %v1754
  %1808 = vmatprep.subr.bf16.mxu0 0
  %1809 = vmatpush1.bf16.msra.mxu0 %v1755
  %1810 = vmatprep.subr.bf16.mxu0 0
  %1811 = vmatpush1.bf16.msra.mxu0 %v1756
  %1812 = vmatprep.mubr.bf16.mxu0 %v1631
  %1813 = vmatmul.mubr.bf16.gmra.mrb[0].mxu0 %v1630
  %v1814 = vpop.f32.mrb[0].mxu0
  %v1815 = vadd.f32 0.0, %v1814
  %v1816 = vpop.f32.mrb[0].mxu0
  %v1817 = vpop.f32.mrb[0].mxu0
  %v1818 = vadd.f32 0.0, %v1817
  %v1819 = vpop.f32.mrb[0].mxu0
  %1820 = vdwg.mxu0
  %1821 = vmatprep.subr.bf16.mxu0 0
  %1822 = vmatpush1.bf16.msra.mxu0 %v1757
  %1823 = vmatprep.subr.bf16.mxu0 0
  %1824 = vmatpush1.bf16.msra.mxu0 %v1758
  %1825 = vmatprep.subr.bf16.mxu0 0
  %1826 = vmatpush1.bf16.msra.mxu0 0
  %1827 = vmatprep.subr.bf16.mxu0 0
  %1828 = vmatpush1.bf16.msra.mxu0 0
  %1829 = vmatprep.subr.bf16.mxu0 0
  %1830 = vmatpush1.bf16.msra.mxu0 0
  %1831 = vmatprep.subr.bf16.mxu0 0
  %1832 = vmatpush1.bf16.msra.mxu0 0
  %1833 = vmatprep.subr.bf16.mxu0 0
  %1834 = vmatpush1.bf16.msra.mxu0 0
  %1835 = vmatprep.subr.bf16.mxu0 0
  %1836 = vmatpush1.bf16.msra.mxu0 0
  %1837 = vmatprep.subr.bf16.mxu0 0
  %1838 = vmatpush1.bf16.msra.mxu0 0
  %1839 = vmatprep.subr.bf16.mxu0 0
  %1840 = vmatpush1.bf16.msra.mxu0 0
  %1841 = vmatprep.subr.bf16.mxu0 0
  %1842 = vmatpush1.bf16.msra.mxu0 0
  %1843 = vmatprep.subr.bf16.mxu0 0
  %1844 = vmatpush1.bf16.msra.mxu0 0
  %1845 = vmatprep.subr.bf16.mxu0 0
  %1846 = vmatpush1.bf16.msra.mxu0 0
  %1847 = vmatprep.subr.bf16.mxu0 0
  %1848 = vmatpush1.bf16.msra.mxu0 0
  %1849 = vmatprep.subr.bf16.mxu0 0
  %1850 = vmatpush1.bf16.msra.mxu0 0
  %1851 = vmatprep.subr.bf16.mxu0 0
  %1852 = vmatpush1.bf16.msra.mxu0 0
  %1853 = vmatprep.mubr.bf16.mxu0 0
  %1854 = vmatmul.mubr.bf16.gmra.mrb[0].mxu0 %v1778
  %v1855 = vpop.f32.mrb[0].mxu0
  %v1856 = vadd.f32 %v1815, %v1855
  %v1857 = vpop.f32.mrb[0].mxu0
  %v1858 = vpop.f32.mrb[0].mxu0
  %v1859 = vadd.f32 %v1818, %v1858
  %v1860 = vpop.f32.mrb[0].mxu0
  %1861 = vdwg.mxu0
  %v1862 = vsel %vm1144, %v1856, 0.0
  %v1863 = vsel %vm1144, %v1859, 0.0
  %v1864 = vadd.f32 %v1862, %v1863
  %v1865 = vrot.slane %v1864, 4
  %v1866 = vadd.f32 %v1864, %v1865
  %v1867 = vrot.slane %v1866, 2
  %v1868 = vadd.f32 %v1866, %v1867
  %v1869 = vrot.slane %v1868, 1
  %v1870 = vadd.f32 %v1868, %v1869
  %v1871 = vrcp.pop 16.0
  %v1872 = vmul.f32 %v1870, %v1871
  %v1873 = vsub.f32 %v1856, %v1872
  %v1874 = vsub.f32 %v1859, %v1872
  %v1875 = vmul.f32 %v1873, %v1873
  %v1876 = vmul.f32 %v1874, %v1874
  %v1877 = vsel %vm1144, %v1875, 0.0
  %v1878 = vsel %vm1144, %v1876, 0.0
  %v1879 = vadd.f32 %v1877, %v1878
  %v1880 = vrot.slane %v1879, 4
  %v1881 = vadd.f32 %v1879, %v1880
  %v1882 = vrot.slane %v1881, 2
  %v1883 = vadd.f32 %v1881, %v1882
  %v1884 = vrot.slane %v1883, 1
  %v1885 = vadd.f32 %v1883, %v1884
  %v1886 = vmul.f32 %v1885, %v1871
  %v1887 = vadd.f32 %v1886, 1e-05
  %v1888 = vrsqrt.pop %v1887
  %v1889 = vmul.f32 %v1873, %v1888
  %v1890 = vmul.f32 %v1874, %v1888
  %vm1891 = vcmp.ge.f32.partialorder %v1889, 0.0
  %vm1892 = vcmp.ge.f32.partialorder %v1890, 0.0
  %v1893 = vmul.f32 %v1889, 0.01
  %v1894 = vmul.f32 %v1890, 0.01
  %v1895 = vsel %vm1891, %v1889, %v1893
  %v1896 = vsel %vm1892, %v1890, %v1894
  %v1898 = vrot.slane %v1895, 1
  %1899 = vrot.lane.b32.xlu0 %v1898, 64
  %v1900 = vpop.permute.xlu0 %1899
  %v1902 = vrot.slane %v1895, 2
  %v1904 = vrot.slane %v1895, 3
  %1905 = vrot.lane.b32.xlu0 %v1904, 64
  %v1906 = vpop.permute.xlu0 %1905
  %v1908 = vrot.slane %v1895, 4
  %v1910 = vrot.slane %v1895, 5
  %1911 = vrot.lane.b32.xlu0 %v1910, 64
  %v1912 = vpop.permute.xlu0 %1911
  %v1914 = vrot.slane %v1895, 6
  %v1916 = vrot.slane %v1895, 7
  %1917 = vrot.lane.b32.xlu0 %v1916, 64
  %v1918 = vpop.permute.xlu0 %1917
  %v1921 = vrot.slane %v1896, 1
  %1922 = vrot.lane.b32.xlu0 %v1921, 64
  %v1923 = vpop.permute.xlu0 %1922
  %v1925 = vrot.slane %v1896, 2
  %v1927 = vrot.slane %v1896, 3
  %1928 = vrot.lane.b32.xlu0 %v1927, 64
  %v1929 = vpop.permute.xlu0 %1928
  %v1931 = vrot.slane %v1896, 4
  %v1933 = vrot.slane %v1896, 5
  %1934 = vrot.lane.b32.xlu0 %v1933, 64
  %v1935 = vpop.permute.xlu0 %1934
  %v1937 = vrot.slane %v1896, 6
  %v1939 = vrot.slane %v1896, 7
  %1940 = vrot.lane.b32.xlu0 %v1939, 64
  %v1941 = vpop.permute.xlu0 %1940
  %v1943 = vsel %vm1144, %v1895, %v1900
  %v1944 = vsel %vm1144, %v1902, %v1906
  %v1945 = vsel %vm1144, %v1908, %v1912
  %v1946 = vsel %vm1144, %v1914, %v1918
  %v1947 = vsel %vm1144, %v1896, %v1923
  %v1948 = vsel %vm1144, %v1925, %v1929
  %v1949 = vsel %vm1144, %v1931, %v1935
  %v1950 = vsel %vm1144, %v1937, %v1941
  %v1951 = vpack.c.bf16 %v1943, %v1943
  %v1952 = vpack.c.bf16 %v1944, %v1944
  %v1953 = vpack.c.bf16 %v1945, %v1945
  %v1954 = vpack.c.bf16 %v1946, %v1946
  %v1955 = vpack.c.bf16 %v1947, %v1947
  %v1956 = vpack.c.bf16 %v1948, %v1948
  %v1957 = vpack.c.bf16 %v1949, %v1949
  %v1958 = vpack.c.bf16 %v1950, %v1950
  %v1959 = vld [vmem:[%s5] sm:$0xf]
  %v1960 = vld [vmem:[%s5 + $0x4] sm:$0xf]
  %v1961 = vld [vmem:[%s5 + $0x8] sm:$0xf]
  %v1962 = vld [vmem:[%s5 + $0xc] sm:$0xf]
  %v1963 = vld [vmem:[%s5 + $0x10] sm:$0xf]
  %v1964 = vld [vmem:[%s5 + $0x14] sm:$0xf]
  %v1965 = vld [vmem:[%s5 + $0x18] sm:$0xf]
  %v1966 = vld [vmem:[%s5 + $0x1c] sm:$0xf]
  %v1967 = vld [vmem:[%s5 + $0x20] sm:$0xf]
  %v1968 = vld [vmem:[%s5 + $0x24] sm:$0xf]
  %v1969 = vld [vmem:[%s5 + $0x28] sm:$0xf]
  %v1970 = vld [vmem:[%s5 + $0x2c] sm:$0xf]
  %v1971 = vld [vmem:[%s5 + $0x30] sm:$0xf]
  %v1972 = vld [vmem:[%s5 + $0x34] sm:$0xf]
  %v1973 = vld [vmem:[%s5 + $0x38] sm:$0xf]
  %v1974 = vld [vmem:[%s5 + $0x3c] sm:$0xf]
  %v1975 = vld [vmem:[%s5 + $0x40] sm:$0xf]
  %v1976 = vld [vmem:[%s5 + $0x44] sm:$0xf]
  %v1977 = vld [vmem:[%s5 + $0x48] sm:$0xf]
  %v1978 = vld [vmem:[%s5 + $0x4c] sm:$0xf]
  %v1979 = vld [vmem:[%s5 + $0x50] sm:$0xf]
  %v1980 = vld [vmem:[%s5 + $0x54] sm:$0xf]
  %v1981 = vld [vmem:[%s5 + $0x58] sm:$0xf]
  %v1982 = vld [vmem:[%s5 + $0x5c] sm:$0xf]
  %v1983 = vld [vmem:[%s5 + $0x60] sm:$0xf]
  %v1984 = vld [vmem:[%s5 + $0x64] sm:$0xf]
  %v1985 = vld [vmem:[%s5 + $0x68] sm:$0xf]
  %v1986 = vld [vmem:[%s5 + $0x6c] sm:$0xf]
  %v1987 = vld [vmem:[%s5 + $0x70] sm:$0xf]
  %v1988 = vld [vmem:[%s5 + $0x74] sm:$0xf]
  %v1989 = vld [vmem:[%s5 + $0x78] sm:$0xf]
  %v1990 = vld [vmem:[%s5 + $0x7c] sm:$0xf]
  %v1991 = vld [vmem:[%s5 + $0x80] sm:$0xf]
  %v1992 = vld [vmem:[%s5 + $0x84] sm:$0xf]
  %v1993 = vld [vmem:[%s5 + $0x88] sm:$0xf]
  %v1994 = vld [vmem:[%s5 + $0x8c] sm:$0xf]
  %v1995 = vld [vmem:[%s5 + $0x90] sm:$0xf]
  %v1996 = vld [vmem:[%s5 + $0x94] sm:$0xf]
  %v1997 = vld [vmem:[%s5 + $0x98] sm:$0xf]
  %v1998 = vld [vmem:[%s5 + $0x9c] sm:$0xf]
  %v1999 = vld [vmem:[%s5 + $0xa0] sm:$0xf]
  %v2000 = vld [vmem:[%s5 + $0xa4] sm:$0xf]
  %v2001 = vld [vmem:[%s5 + $0xa8] sm:$0xf]
  %v2002 = vld [vmem:[%s5 + $0xac] sm:$0xf]
  %v2003 = vld [vmem:[%s5 + $0xb0] sm:$0xf]
  %v2004 = vld [vmem:[%s5 + $0xb4] sm:$0xf]
  %v2005 = vld [vmem:[%s5 + $0xb8] sm:$0xf]
  %v2006 = vld [vmem:[%s5 + $0xbc] sm:$0xf]
  %v2007 = vld [vmem:[%s5 + $0xc0] sm:$0xf]
  %v2008 = vld [vmem:[%s5 + $0xc4] sm:$0xf]
  %v2009 = vld [vmem:[%s5 + $0xc8] sm:$0xf]
  %v2010 = vld [vmem:[%s5 + $0xcc] sm:$0xf]
  %v2011 = vld [vmem:[%s5 + $0xd0] sm:$0xf]
  %v2012 = vld [vmem:[%s5 + $0xd4] sm:$0xf]
  %v2013 = vld [vmem:[%s5 + $0xd8] sm:$0xf]
  %v2014 = vld [vmem:[%s5 + $0xdc] sm:$0xf]
  %v2015 = vld [vmem:[%s5 + $0xe0] sm:$0xf]
  %v2016 = vld [vmem:[%s5 + $0xe4] sm:$0xf]
  %v2017 = vld [vmem:[%s5 + $0xe8] sm:$0xf]
  %v2018 = vld [vmem:[%s5 + $0xec] sm:$0xf]
  %v2019 = vld [vmem:[%s5 + $0xf0] sm:$0xf]
  %v2020 = vld [vmem:[%s5 + $0xf4] sm:$0xf]
  %v2021 = vld [vmem:[%s5 + $0xf8] sm:$0xf]
  %v2022 = vld [vmem:[%s5 + $0xfc] sm:$0xf]
  %v2023 = vld [vmem:[%s5 + $0x100] sm:$0xf]
  %v2024 = vld [vmem:[%s5 + $0x104] sm:$0xf]
  %v2025 = vld [vmem:[%s5 + $0x108] sm:$0xf]
  %v2026 = vld [vmem:[%s5 + $0x10c] sm:$0xf]
  %v2027 = vld [vmem:[%s5 + $0x110] sm:$0xf]
  %v2028 = vld [vmem:[%s5 + $0x114] sm:$0xf]
  %v2029 = vld [vmem:[%s5 + $0x118] sm:$0xf]
  %v2030 = vld [vmem:[%s5 + $0x11c] sm:$0xf]
  %v2031 = vld [vmem:[%s5 + $0x120] sm:$0xf]
  %v2032 = vld [vmem:[%s5 + $0x124] sm:$0xf]
  %v2033 = vld [vmem:[%s5 + $0x128] sm:$0xf]
  %v2034 = vld [vmem:[%s5 + $0x12c] sm:$0xf]
  %v2035 = vld [vmem:[%s5 + $0x130] sm:$0xf]
  %v2036 = vld [vmem:[%s5 + $0x134] sm:$0xf]
  %v2037 = vld [vmem:[%s5 + $0x138] sm:$0xf]
  %v2038 = vld [vmem:[%s5 + $0x13c] sm:$0xf]
  %v2039 = vld [vmem:[%s5 + $0x140] sm:$0xf]
  %v2040 = vld [vmem:[%s5 + $0x144] sm:$0xf]
  %v2041 = vld [vmem:[%s5 + $0x148] sm:$0xf]
  %v2042 = vld [vmem:[%s5 + $0x14c] sm:$0xf]
  %v2043 = vld [vmem:[%s5 + $0x150] sm:$0xf]
  %v2044 = vld [vmem:[%s5 + $0x154] sm:$0xf]
  %v2045 = vld [vmem:[%s5 + $0x158] sm:$0xf]
  %v2046 = vld [vmem:[%s5 + $0x15c] sm:$0xf]
  %v2047 = vld [vmem:[%s5 + $0x160] sm:$0xf]
  %v2048 = vld [vmem:[%s5 + $0x164] sm:$0xf]
  %v2049 = vld [vmem:[%s5 + $0x168] sm:$0xf]
  %v2050 = vld [vmem:[%s5 + $0x16c] sm:$0xf]
  %v2051 = vld [vmem:[%s5 + $0x170] sm:$0xf]
  %v2052 = vld [vmem:[%s5 + $0x174] sm:$0xf]
  %v2053 = vld [vmem:[%s5 + $0x178] sm:$0xf]
  %v2054 = vld [vmem:[%s5 + $0x17c] sm:$0xf]
  %v2055 = vld [vmem:[%s5 + $0x180] sm:$0xf]
  %v2056 = vld [vmem:[%s5 + $0x184] sm:$0xf]
  %v2057 = vld [vmem:[%s5 + $0x188] sm:$0xf]
  %v2058 = vld [vmem:[%s5 + $0x18c] sm:$0xf]
  %v2059 = vld [vmem:[%s5 + $0x190] sm:$0xf]
  %v2060 = vld [vmem:[%s5 + $0x194] sm:$0xf]
  %v2061 = vld [vmem:[%s5 + $0x198] sm:$0xf]
  %v2062 = vld [vmem:[%s5 + $0x19c] sm:$0xf]
  %v2063 = vld [vmem:[%s5 + $0x1a0] sm:$0xf]
  %v2064 = vld [vmem:[%s5 + $0x1a4] sm:$0xf]
  %v2065 = vld [vmem:[%s5 + $0x1a8] sm:$0xf]
  %v2066 = vld [vmem:[%s5 + $0x1ac] sm:$0xf]
  %v2067 = vld [vmem:[%s5 + $0x1b0] sm:$0xf]
  %v2068 = vld [vmem:[%s5 + $0x1b4] sm:$0xf]
  %v2069 = vld [vmem:[%s5 + $0x1b8] sm:$0xf]
  %v2070 = vld [vmem:[%s5 + $0x1bc] sm:$0xf]
  %v2071 = vld [vmem:[%s5 + $0x1c0] sm:$0xf]
  %v2072 = vld [vmem:[%s5 + $0x1c4] sm:$0xf]
  %v2073 = vld [vmem:[%s5 + $0x1c8] sm:$0xf]
  %v2074 = vld [vmem:[%s5 + $0x1cc] sm:$0xf]
  %v2075 = vld [vmem:[%s5 + $0x1d0] sm:$0xf]
  %v2076 = vld [vmem:[%s5 + $0x1d4] sm:$0xf]
  %v2077 = vld [vmem:[%s5 + $0x1d8] sm:$0xf]
  %v2078 = vld [vmem:[%s5 + $0x1dc] sm:$0xf]
  %v2079 = vld [vmem:[%s5 + $0x1e0] sm:$0xf]
  %v2080 = vld [vmem:[%s5 + $0x1e4] sm:$0xf]
  %v2081 = vld [vmem:[%s5 + $0x1e8] sm:$0xf]
  %v2082 = vld [vmem:[%s5 + $0x1ec] sm:$0xf]
  %v2083 = vld [vmem:[%s5 + $0x1f0] sm:$0xf]
  %v2084 = vld [vmem:[%s5 + $0x1f4] sm:$0xf]
  %v2085 = vld [vmem:[%s5 + $0x1f8] sm:$0xf]
  %v2086 = vld [vmem:[%s5 + $0x1fc] sm:$0xf]
  %v2215 = vunpack.c.l.b16 %v1959
  %v2216 = vunpack.c.l.b16 %v1960
  %v2217 = vunpack.c.l.b16 %v1961
  %v2218 = vunpack.c.l.b16 %v1962
  %v2219 = vunpack.c.l.b16 %v1963
  %v2220 = vunpack.c.l.b16 %v1964
  %v2221 = vunpack.c.l.b16 %v1965
  %v2222 = vunpack.c.l.b16 %v1966
  %v2223 = vunpack.c.l.b16 %v1967
  %v2224 = vunpack.c.l.b16 %v1968
  %v2225 = vunpack.c.l.b16 %v1969
  %v2226 = vunpack.c.l.b16 %v1970
  %v2227 = vunpack.c.l.b16 %v1971
  %v2228 = vunpack.c.l.b16 %v1972
  %v2229 = vunpack.c.l.b16 %v1973
  %v2230 = vunpack.c.l.b16 %v1974
  %v2231 = vunpack.c.l.b16 %v1975
  %v2232 = vunpack.c.l.b16 %v1976
  %v2233 = vunpack.c.l.b16 %v1977
  %v2234 = vunpack.c.l.b16 %v1978
  %v2235 = vunpack.c.l.b16 %v1979
  %v2236 = vunpack.c.l.b16 %v1980
  %v2237 = vunpack.c.l.b16 %v1981
  %v2238 = vunpack.c.l.b16 %v1982
  %v2239 = vunpack.c.l.b16 %v1983
  %v2240 = vunpack.c.l.b16 %v1984
  %v2241 = vunpack.c.l.b16 %v1985
  %v2242 = vunpack.c.l.b16 %v1986
  %v2243 = vunpack.c.l.b16 %v1987
  %v2244 = vunpack.c.l.b16 %v1988
  %v2245 = vunpack.c.l.b16 %v1989
  %v2246 = vunpack.c.l.b16 %v1990
  %v2247 = vunpack.c.l.b16 %v1991
  %v2248 = vunpack.c.l.b16 %v1992
  %v2249 = vunpack.c.l.b16 %v1993
  %v2250 = vunpack.c.l.b16 %v1994
  %v2251 = vunpack.c.l.b16 %v1995
  %v2252 = vunpack.c.l.b16 %v1996
  %v2253 = vunpack.c.l.b16 %v1997
  %v2254 = vunpack.c.l.b16 %v1998
  %v2255 = vunpack.c.l.b16 %v1999
  %v2256 = vunpack.c.l.b16 %v2000
  %v2257 = vunpack.c.l.b16 %v2001
  %v2258 = vunpack.c.l.b16 %v2002
  %v2259 = vunpack.c.l.b16 %v2003
  %v2260 = vunpack.c.l.b16 %v2004
  %v2261 = vunpack.c.l.b16 %v2005
  %v2262 = vunpack.c.l.b16 %v2006
  %v2263 = vunpack.c.l.b16 %v2007
  %v2264 = vunpack.c.l.b16 %v2008
  %v2265 = vunpack.c.l.b16 %v2009
  %v2266 = vunpack.c.l.b16 %v2010
  %v2267 = vunpack.c.l.b16 %v2011
  %v2268 = vunpack.c.l.b16 %v2012
  %v2269 = vunpack.c.l.b16 %v2013
  %v2270 = vunpack.c.l.b16 %v2014
  %v2271 = vunpack.c.l.b16 %v2015
  %v2272 = vunpack.c.l.b16 %v2016
  %v2273 = vunpack.c.l.b16 %v2017
  %v2274 = vunpack.c.l.b16 %v2018
  %v2275 = vunpack.c.l.b16 %v2019
  %v2276 = vunpack.c.l.b16 %v2020
  %v2277 = vunpack.c.l.b16 %v2021
  %v2278 = vunpack.c.l.b16 %v2022
  %v2279 = vunpack.c.l.b16 %v2023
  %v2280 = vunpack.c.l.b16 %v2024
  %v2281 = vunpack.c.l.b16 %v2025
  %v2282 = vunpack.c.l.b16 %v2026
  %v2283 = vunpack.c.l.b16 %v2027
  %v2284 = vunpack.c.l.b16 %v2028
  %v2285 = vunpack.c.l.b16 %v2029
  %v2286 = vunpack.c.l.b16 %v2030
  %v2287 = vunpack.c.l.b16 %v2031
  %v2288 = vunpack.c.l.b16 %v2032
  %v2289 = vunpack.c.l.b16 %v2033
  %v2290 = vunpack.c.l.b16 %v2034
  %v2291 = vunpack.c.l.b16 %v2035
  %v2292 = vunpack.c.l.b16 %v2036
  %v2293 = vunpack.c.l.b16 %v2037
  %v2294 = vunpack.c.l.b16 %v2038
  %v2295 = vunpack.c.l.b16 %v2039
  %v2296 = vunpack.c.l.b16 %v2040
  %v2297 = vunpack.c.l.b16 %v2041
  %v2298 = vunpack.c.l.b16 %v2042
  %v2299 = vunpack.c.l.b16 %v2043
  %v2300 = vunpack.c.l.b16 %v2044
  %v2301 = vunpack.c.l.b16 %v2045
  %v2302 = vunpack.c.l.b16 %v2046
  %v2303 = vunpack.c.l.b16 %v2047
  %v2304 = vunpack.c.l.b16 %v2048
  %v2305 = vunpack.c.l.b16 %v2049
  %v2306 = vunpack.c.l.b16 %v2050
  %v2307 = vunpack.c.l.b16 %v2051
  %v2308 = vunpack.c.l.b16 %v2052
  %v2309 = vunpack.c.l.b16 %v2053
  %v2310 = vunpack.c.l.b16 %v2054
  %v2311 = vunpack.c.l.b16 %v2055
  %v2312 = vunpack.c.l.b16 %v2056
  %v2313 = vunpack.c.l.b16 %v2057
  %v2314 = vunpack.c.l.b16 %v2058
  %v2315 = vunpack.c.l.b16 %v2059
  %v2316 = vunpack.c.l.b16 %v2060
  %v2317 = vunpack.c.l.b16 %v2061
  %v2318 = vunpack.c.l.b16 %v2062
  %v2319 = vunpack.c.l.b16 %v2063
  %v2320 = vunpack.c.l.b16 %v2064
  %v2321 = vunpack.c.l.b16 %v2065
  %v2322 = vunpack.c.l.b16 %v2066
  %v2323 = vunpack.c.l.b16 %v2067
  %v2324 = vunpack.c.l.b16 %v2068
  %v2325 = vunpack.c.l.b16 %v2069
  %v2326 = vunpack.c.l.b16 %v2070
  %v2327 = vunpack.c.l.b16 %v2071
  %v2328 = vunpack.c.l.b16 %v2072
  %v2329 = vunpack.c.l.b16 %v2073
  %v2330 = vunpack.c.l.b16 %v2074
  %v2331 = vunpack.c.l.b16 %v2075
  %v2332 = vunpack.c.l.b16 %v2076
  %v2333 = vunpack.c.l.b16 %v2077
  %v2334 = vunpack.c.l.b16 %v2078
  %v2335 = vunpack.c.l.b16 %v2079
  %v2336 = vunpack.c.l.b16 %v2080
  %v2337 = vunpack.c.l.b16 %v2081
  %v2338 = vunpack.c.l.b16 %v2082
  %v2339 = vunpack.c.l.b16 %v2083
  %v2340 = vunpack.c.l.b16 %v2084
  %v2341 = vunpack.c.l.b16 %v2085
  %v2342 = vunpack.c.l.b16 %v2086
  %v2343 = vpack.c.b16 %v2216, %v2215
  %v2344 = vpack.c.b16 %v2218, %v2217
  %v2345 = vpack.c.b16 %v2220, %v2219
  %v2346 = vpack.c.b16 %v2222, %v2221
  %v2347 = vpack.c.b16 %v2224, %v2223
  %v2348 = vpack.c.b16 %v2226, %v2225
  %v2349 = vpack.c.b16 %v2228, %v2227
  %v2350 = vpack.c.b16 %v2230, %v2229
  %v2351 = vpack.c.b16 %v2232, %v2231
  %v2352 = vpack.c.b16 %v2234, %v2233
  %v2353 = vpack.c.b16 %v2236, %v2235
  %v2354 = vpack.c.b16 %v2238, %v2237
  %v2355 = vpack.c.b16 %v2240, %v2239
  %v2356 = vpack.c.b16 %v2242, %v2241
  %v2357 = vpack.c.b16 %v2244, %v2243
  %v2358 = vpack.c.b16 %v2246, %v2245
  %v2359 = vpack.c.b16 %v2248, %v2247
  %v2360 = vpack.c.b16 %v2250, %v2249
  %v2361 = vpack.c.b16 %v2252, %v2251
  %v2362 = vpack.c.b16 %v2254, %v2253
  %v2363 = vpack.c.b16 %v2256, %v2255
  %v2364 = vpack.c.b16 %v2258, %v2257
  %v2365 = vpack.c.b16 %v2260, %v2259
  %v2366 = vpack.c.b16 %v2262, %v2261
  %v2367 = vpack.c.b16 %v2264, %v2263
  %v2368 = vpack.c.b16 %v2266, %v2265
  %v2369 = vpack.c.b16 %v2268, %v2267
  %v2370 = vpack.c.b16 %v2270, %v2269
  %v2371 = vpack.c.b16 %v2272, %v2271
  %v2372 = vpack.c.b16 %v2274, %v2273
  %v2373 = vpack.c.b16 %v2276, %v2275
  %v2374 = vpack.c.b16 %v2278, %v2277
  %v2375 = vpack.c.b16 %v2280, %v2279
  %v2376 = vpack.c.b16 %v2282, %v2281
  %v2377 = vpack.c.b16 %v2284, %v2283
  %v2378 = vpack.c.b16 %v2286, %v2285
  %v2379 = vpack.c.b16 %v2288, %v2287
  %v2380 = vpack.c.b16 %v2290, %v2289
  %v2381 = vpack.c.b16 %v2292, %v2291
  %v2382 = vpack.c.b16 %v2294, %v2293
  %v2383 = vpack.c.b16 %v2296, %v2295
  %v2384 = vpack.c.b16 %v2298, %v2297
  %v2385 = vpack.c.b16 %v2300, %v2299
  %v2386 = vpack.c.b16 %v2302, %v2301
  %v2387 = vpack.c.b16 %v2304, %v2303
  %v2388 = vpack.c.b16 %v2306, %v2305
  %v2389 = vpack.c.b16 %v2308, %v2307
  %v2390 = vpack.c.b16 %v2310, %v2309
  %v2391 = vpack.c.b16 %v2312, %v2311
  %v2392 = vpack.c.b16 %v2314, %v2313
  %v2393 = vpack.c.b16 %v2316, %v2315
  %v2394 = vpack.c.b16 %v2318, %v2317
  %v2395 = vpack.c.b16 %v2320, %v2319
  %v2396 = vpack.c.b16 %v2322, %v2321
  %v2397 = vpack.c.b16 %v2324, %v2323
  %v2398 = vpack.c.b16 %v2326, %v2325
  %v2399 = vpack.c.b16 %v2328, %v2327
  %v2400 = vpack.c.b16 %v2330, %v2329
  %v2401 = vpack.c.b16 %v2332, %v2331
  %v2402 = vpack.c.b16 %v2334, %v2333
  %v2403 = vpack.c.b16 %v2336, %v2335
  %v2404 = vpack.c.b16 %v2338, %v2337
  %v2405 = vpack.c.b16 %v2340, %v2339
  %v2406 = vpack.c.b16 %v2342, %v2341
  %2471 = vmatprep.subr.bf16.mxu0 0
  %2472 = vmatpush1.bf16.msra.mxu0 %v2343
  %2473 = vmatprep.subr.bf16.mxu0 0
  %2474 = vmatpush1.bf16.msra.mxu0 %v2344
  %2475 = vmatprep.subr.bf16.mxu0 0
  %2476 = vmatpush1.bf16.msra.mxu0 %v2345
  %2477 = vmatprep.subr.bf16.mxu0 0
  %2478 = vmatpush1.bf16.msra.mxu0 %v2346
  %2479 = vmatprep.subr.bf16.mxu0 0
  %2480 = vmatpush1.bf16.msra.mxu0 %v2347
  %2481 = vmatprep.subr.bf16.mxu0 0
  %2482 = vmatpush1.bf16.msra.mxu0 %v2348
  %2483 = vmatprep.subr.bf16.mxu0 0
  %2484 = vmatpush1.bf16.msra.mxu0 %v2349
  %2485 = vmatprep.subr.bf16.mxu0 0
  %2486 = vmatpush1.bf16.msra.mxu0 %v2350
  %2487 = vmatprep.subr.bf16.mxu0 0
  %2488 = vmatpush1.bf16.msra.mxu0 %v2351
  %2489 = vmatprep.subr.bf16.mxu0 0
  %2490 = vmatpush1.bf16.msra.mxu0 %v2352
  %2491 = vmatprep.subr.bf16.mxu0 0
  %2492 = vmatpush1.bf16.msra.mxu0 %v2353
  %2493 = vmatprep.subr.bf16.mxu0 0
  %2494 = vmatpush1.bf16.msra.mxu0 %v2354
  %2495 = vmatprep.subr.bf16.mxu0 0
  %2496 = vmatpush1.bf16.msra.mxu0 %v2355
  %2497 = vmatprep.subr.bf16.mxu0 0
  %2498 = vmatpush1.bf16.msra.mxu0 %v2356
  %2499 = vmatprep.subr.bf16.mxu0 0
  %2500 = vmatpush1.bf16.msra.mxu0 %v2357
  %2501 = vmatprep.subr.bf16.mxu0 0
  %2502 = vmatpush1.bf16.msra.mxu0 %v2358
  %2503 = vmatprep.mubr.bf16.mxu0 %v1952
  %2504 = vmatmul.mubr.bf16.gmra.mrb[0].mxu0 %v1951
  %v2505 = vpop.f32.mrb[0].mxu0
  %v2506 = vadd.f32 0.0, %v2505
  %v2507 = vpop.f32.mrb[0].mxu0
  %v2508 = vpop.f32.mrb[0].mxu0
  %v2509 = vpop.f32.mrb[0].mxu0
  %2510 = vdwg.mxu0
  %2511 = vmatprep.subr.bf16.mxu0 0
  %2512 = vmatpush1.bf16.msra.mxu0 %v2359
  %2513 = vmatprep.subr.bf16.mxu0 0
  %2514 = vmatpush1.bf16.msra.mxu0 %v2360
  %2515 = vmatprep.subr.bf16.mxu0 0
  %2516 = vmatpush1.bf16.msra.mxu0 %v2361
  %2517 = vmatprep.subr.bf16.mxu0 0
  %2518 = vmatpush1.bf16.msra.mxu0 %v2362
  %2519 = vmatprep.subr.bf16.mxu0 0
  %2520 = vmatpush1.bf16.msra.mxu0 %v2363
  %2521 = vmatprep.subr.bf16.mxu0 0
  %2522 = vmatpush1.bf16.msra.mxu0 %v2364
  %2523 = vmatprep.subr.bf16.mxu0 0
  %2524 = vmatpush1.bf16.msra.mxu0 %v2365
  %2525 = vmatprep.subr.bf16.mxu0 0
  %2526 = vmatpush1.bf16.msra.mxu0 %v2366
  %2527 = vmatprep.subr.bf16.mxu0 0
  %2528 = vmatpush1.bf16.msra.mxu0 %v2367
  %2529 = vmatprep.subr.bf16.mxu0 0
  %2530 = vmatpush1.bf16.msra.mxu0 %v2368
  %2531 = vmatprep.subr.bf16.mxu0 0
  %2532 = vmatpush1.bf16.msra.mxu0 %v2369
  %2533 = vmatprep.subr.bf16.mxu0 0
  %2534 = vmatpush1.bf16.msra.mxu0 %v2370
  %2535 = vmatprep.subr.bf16.mxu0 0
  %2536 = vmatpush1.bf16.msra.mxu0 %v2371
  %2537 = vmatprep.subr.bf16.mxu0 0
  %2538 = vmatpush1.bf16.msra.mxu0 %v2372
  %2539 = vmatprep.subr.bf16.mxu0 0
  %2540 = vmatpush1.bf16.msra.mxu0 %v2373
  %2541 = vmatprep.subr.bf16.mxu0 0
  %2542 = vmatpush1.bf16.msra.mxu0 %v2374
  %2543 = vmatprep.mubr.bf16.mxu0 %v1954
  %2544 = vmatmul.mubr.bf16.gmra.mrb[0].mxu0 %v1953
  %v2545 = vpop.f32.mrb[0].mxu0
  %v2546 = vadd.f32 %v2506, %v2545
  %v2547 = vpop.f32.mrb[0].mxu0
  %v2548 = vpop.f32.mrb[0].mxu0
  %v2549 = vpop.f32.mrb[0].mxu0
  %2550 = vdwg.mxu0
  %2551 = vmatprep.subr.bf16.mxu0 0
  %2552 = vmatpush1.bf16.msra.mxu0 %v2375
  %2553 = vmatprep.subr.bf16.mxu0 0
  %2554 = vmatpush1.bf16.msra.mxu0 %v2376
  %2555 = vmatprep.subr.bf16.mxu0 0
  %2556 = vmatpush1.bf16.msra.mxu0 %v2377
  %2557 = vmatprep.subr.bf16.mxu0 0
  %2558 = vmatpush1.bf16.msra.mxu0 %v2378
  %2559 = vmatprep.subr.bf16.mxu0 0
  %2560 = vmatpush1.bf16.msra.mxu0 %v2379
  %2561 = vmatprep.subr.bf16.mxu0 0
  %2562 = vmatpush1.bf16.msra.mxu0 %v2380
  %2563 = vmatprep.subr.bf16.mxu0 0
  %2564 = vmatpush1.bf16.msra.mxu0 %v2381
  %2565 = vmatprep.subr.bf16.mxu0 0
  %2566 = vmatpush1.bf16.msra.mxu0 %v2382
  %2567 = vmatprep.subr.bf16.mxu0 0
  %2568 = vmatpush1.bf16.msra.mxu0 %v2383
  %2569 = vmatprep.subr.bf16.mxu0 0
  %2570 = vmatpush1.bf16.msra.mxu0 %v2384
  %2571 = vmatprep.subr.bf16.mxu0 0
  %2572 = vmatpush1.bf16.msra.mxu0 %v2385
  %2573 = vmatprep.subr.bf16.mxu0 0
  %2574 = vmatpush1.bf16.msra.mxu0 %v2386
  %2575 = vmatprep.subr.bf16.mxu0 0
  %2576 = vmatpush1.bf16.msra.mxu0 %v2387
  %2577 = vmatprep.subr.bf16.mxu0 0
  %2578 = vmatpush1.bf16.msra.mxu0 %v2388
  %2579 = vmatprep.subr.bf16.mxu0 0
  %2580 = vmatpush1.bf16.msra.mxu0 %v2389
  %2581 = vmatprep.subr.bf16.mxu0 0
  %2582 = vmatpush1.bf16.msra.mxu0 %v2390
  %2583 = vmatprep.mubr.bf16.mxu0 %v1956
  %2584 = vmatmul.mubr.bf16.gmra.mrb[0].mxu0 %v1955
  %v2585 = vpop.f32.mrb[0].mxu0
  %v2586 = vadd.f32 %v2546, %v2585
  %v2587 = vpop.f32.mrb[0].mxu0
  %v2588 = vpop.f32.mrb[0].mxu0
  %v2589 = vpop.f32.mrb[0].mxu0
  %2590 = vdwg.mxu0
  %2591 = vmatprep.subr.bf16.mxu0 0
  %2592 = vmatpush1.bf16.msra.mxu0 %v2391
  %2593 = vmatprep.subr.bf16.mxu0 0
  %2594 = vmatpush1.bf16.msra.mxu0 %v2392
  %2595 = vmatprep.subr.bf16.mxu0 0
  %2596 = vmatpush1.bf16.msra.mxu0 %v2393
  %2597 = vmatprep.subr.bf16.mxu0 0
  %2598 = vmatpush1.bf16.msra.mxu0 %v2394
  %2599 = vmatprep.subr.bf16.mxu0 0
  %2600 = vmatpush1.bf16.msra.mxu0 %v2395
  %2601 = vmatprep.subr.bf16.mxu0 0
  %2602 = vmatpush1.bf16.msra.mxu0 %v2396
  %2603 = vmatprep.subr.bf16.mxu0 0
  %2604 = vmatpush1.bf16.msra.mxu0 %v2397
  %2605 = vmatprep.subr.bf16.mxu0 0
  %2606 = vmatpush1.bf16.msra.mxu0 %v2398
  %2607 = vmatprep.subr.bf16.mxu0 0
  %2608 = vmatpush1.bf16.msra.mxu0 %v2399
  %2609 = vmatprep.subr.bf16.mxu0 0
  %2610 = vmatpush1.bf16.msra.mxu0 %v2400
  %2611 = vmatprep.subr.bf16.mxu0 0
  %2612 = vmatpush1.bf16.msra.mxu0 %v2401
  %2613 = vmatprep.subr.bf16.mxu0 0
  %2614 = vmatpush1.bf16.msra.mxu0 %v2402
  %2615 = vmatprep.subr.bf16.mxu0 0
  %2616 = vmatpush1.bf16.msra.mxu0 %v2403
  %2617 = vmatprep.subr.bf16.mxu0 0
  %2618 = vmatpush1.bf16.msra.mxu0 %v2404
  %2619 = vmatprep.subr.bf16.mxu0 0
  %2620 = vmatpush1.bf16.msra.mxu0 %v2405
  %2621 = vmatprep.subr.bf16.mxu0 0
  %2622 = vmatpush1.bf16.msra.mxu0 %v2406
  %2623 = vmatprep.mubr.bf16.mxu0 %v1958
  %2624 = vmatmul.mubr.bf16.gmra.mrb[0].mxu0 %v1957
  %v2625 = vpop.f32.mrb[0].mxu0
  %v2626 = vadd.f32 %v2586, %v2625
  %v2627 = vpop.f32.mrb[0].mxu0
  %v2628 = vpop.f32.mrb[0].mxu0
  %v2629 = vpop.f32.mrb[0].mxu0
  %2630 = vdwg.mxu0
  %vm2631 = vcmask 516096
  %2632 = vst.msk [vmem:[%s6] sm:$0x1] %vm2631, %v2626
  // Predicated region
  $region26: #{encoder_forward.1} parent=0 // pred_check
    _
  $region27: #{encoder_forward.1} parent=0 // pred_check_branch
    %2634 = sbr.rel (0) target = $region29
  $region28: #{encoder_forward.1} parent=0 // pred_region
    _
  $region29: #{encoder_forward.1} parent=0 // pred_fallthru
    _
  // Predicated region
  $region30: #{encoder_forward.1} parent=0 // pred_check
    _
  $region31: #{encoder_forward.1} parent=0 // pred_check_branch
    %2636 = sbr.rel (0) target = $region33
  $region32: #{encoder_forward.1} parent=0 // pred_region
    _
  $region33: #{encoder_forward.1} parent=0 // pred_fallthru
    _

</llo_original>
